<compile_context>
chip_gen: v7x
topology: tpu7x:2x2x1
jax: 0.10.0
libtpu: 0.0.40
codegen_flags: <defaults>
</compile_context>

<pallas_src>
import functools
import math

import jax
import jax.numpy as jnp
from jax.experimental import pallas as pl
from jax.experimental.pallas import tpu as pltpu


# ----------------------------------------------------------------------------
# Pallas kernels
# ----------------------------------------------------------------------------
def _layernorm(x, gamma, beta, eps=1e-5):
    mu = jnp.mean(x, axis=-1, keepdims=True)
    var = jnp.mean((x - mu) ** 2, axis=-1, keepdims=True)
    return (x - mu) * jax.lax.rsqrt(var + eps) * gamma + beta


def transformer_block_kernel(
    x_ref,
    wqkv_ref, bqkv_ref, wo_ref, bo_ref,
    ln1g_ref, ln1b_ref, ln2g_ref, ln2b_ref,
    w1_ref, b1_ref, w2_ref, b2_ref,
    out_ref,
    *, num_heads,
):
    # One grid step == one batch element.
    x = x_ref[0]                       # (S, D) f32
    S, D = x.shape
    dh = D // num_heads
    scale = 1.0 / math.sqrt(dh)

    x_bf = x.astype(jnp.bfloat16)

    # Fused QKV projection: one MXU pass with N = 3*D, f32 accumulation.
    qkv = (jnp.dot(x_bf, wqkv_ref[...], preferred_element_type=jnp.float32)
           + bqkv_ref[...])                                   # (S, 3D) f32
    q = qkv[:, :D] * scale             # fold 1/sqrt(dh) into q once
    k = qkv[:, D:2 * D]
    v = qkv[:, 2 * D:]

    q_bf = q.astype(jnp.bfloat16)
    k_bf = k.astype(jnp.bfloat16)
    v_bf = v.astype(jnp.bfloat16)

    # Per-head scaled-dot-product attention (static unrolled loop over heads).
    # Context is assembled with a single concatenate at the end instead of
    # masked sub-lane column stores into a scratch buffer.
    head_ctx = []
    for h in range(num_heads):
        qs = q_bf[:, h * dh:(h + 1) * dh]          # (S, dh)
        ks = k_bf[:, h * dh:(h + 1) * dh]
        vs = v_bf[:, h * dh:(h + 1) * dh]
        # QK^T by contracting the last axes directly (no explicit transpose).
        scores = jax.lax.dot_general(
            qs, ks, (((1,), (1,)), ((), ())),
            preferred_element_type=jnp.float32)    # (S, S) f32
        # TODO(synk): attention mask path (forward is called with mask=None)
        scores = scores - jnp.max(scores, axis=-1, keepdims=True)
        p = jnp.exp(scores)
        denom = jnp.sum(p, axis=-1, keepdims=True)
        p = p * pl.reciprocal(denom, approx=True)
        head_ctx.append(jnp.dot(p.astype(jnp.bfloat16), vs,
                                preferred_element_type=jnp.float32))
    ctx = jnp.concatenate(head_ctx, axis=-1)       # (S, D) f32

    attn_out = (jnp.dot(ctx.astype(jnp.bfloat16), wo_ref[...],
                        preferred_element_type=jnp.float32) + bo_ref[...])

    out1 = _layernorm(x + attn_out, ln1g_ref[...], ln1b_ref[...])

    h_mid = jnp.maximum(
        jnp.dot(out1.astype(jnp.bfloat16), w1_ref[...],
                preferred_element_type=jnp.float32) + b1_ref[...],
        0.0)
    ffn = (jnp.dot(h_mid.astype(jnp.bfloat16), w2_ref[...],
                   preferred_element_type=jnp.float32) + b2_ref[...])

    out2 = _layernorm(out1 + ffn, ln2g_ref[...], ln2b_ref[...])
    out_ref[0] = out2


def final_linear_kernel(x_ref, w_ref, b_ref, out_ref):
    out_ref[...] = (
        jnp.dot(x_ref[...].astype(jnp.bfloat16), w_ref[...],
                preferred_element_type=jnp.float32) + b_ref[...])


# ----------------------------------------------------------------------------
# Wrappers
# ----------------------------------------------------------------------------
_BLOCK_PARAM_ORDER = ("wqkv", "bqkv", "wo", "bo",
                      "ln1g", "ln1b", "ln2g", "ln2b",
                      "w1", "b1", "w2", "b2")


def run_transformer_block(x, params, num_heads):
    B, S, D = x.shape
    kernel = functools.partial(transformer_block_kernel, num_heads=num_heads)

    in_specs = [pl.BlockSpec((1, S, D), lambda b: (b, 0, 0))]
    args = [x]
    for name in _BLOCK_PARAM_ORDER:
        w = params[name]
        # Constant index_map -> weight blocks stay resident across the grid.
        in_specs.append(pl.BlockSpec(w.shape, lambda b, n=w.ndim: (0,) * n))
        args.append(w)

    return pl.pallas_call(
        kernel,
        out_shape=jax.ShapeDtypeStruct((B, S, D), jnp.float32),
        grid_spec=pltpu.PrefetchScalarGridSpec(
            num_scalar_prefetch=0,
            grid=(B,),
            in_specs=in_specs,
            out_specs=pl.BlockSpec((1, S, D), lambda b: (b, 0, 0)),
        ),
        compiler_params=pltpu.CompilerParams(dimension_semantics=("parallel",)),
    )(*args)


def run_final_linear(x2d, w, b, tm=256, tn=256):
    # Tiled over (rows, vocab) so the (D, V) weight and (M, V) output stream
    # through VMEM in lane-dense blocks.  Contraction dim D stays whole
    # (d_model comfortably fits VMEM).
    M, D = x2d.shape
    V = w.shape[1]
    tm = min(tm, M)
    tn = min(tn, V)
    grid = (pl.cdiv(M, tm), pl.cdiv(V, tn))
    return pl.pallas_call(
        final_linear_kernel,
        out_shape=jax.ShapeDtypeStruct((M, V), jnp.float32),
        grid_spec=pltpu.PrefetchScalarGridSpec(
            num_scalar_prefetch=0,
            grid=grid,
            in_specs=[pl.BlockSpec((tm, D), lambda i, j: (i, 0)),
                      pl.BlockSpec((D, tn), lambda i, j: (0, j)),
                      pl.BlockSpec((1, tn), lambda i, j: (0, j))],
            out_specs=pl.BlockSpec((tm, tn), lambda i, j: (i, j)),
        ),
        compiler_params=pltpu.CompilerParams(
            dimension_semantics=("parallel", "parallel")),
    )(x2d, w, b)


def sinusoidal_positional_encoding(max_len, d_model):
    pos = jnp.arange(max_len, dtype=jnp.float32)[:, None]
    div = jnp.exp(jnp.arange(0, d_model, 2, dtype=jnp.float32)
                  * (-math.log(10000.0) / d_model))
    pe = jnp.zeros((max_len, d_model), dtype=jnp.float32)
    pe = pe.at[:, 0::2].set(jnp.sin(pos * div))
    pe = pe.at[:, 1::2].set(jnp.cos(pos * div))
    return pe


def init_params(key, num_layers, d_model, num_heads, dff,
                input_vocab_size, target_vocab_size):
    keys = jax.random.split(key, num_layers + 2)

    def dense(k, fan_in, fan_out):
        kw, kb = jax.random.split(k)
        w = jax.random.normal(kw, (fan_in, fan_out), jnp.float32) * 0.02
        b = jax.random.normal(kb, (1, fan_out), jnp.float32) * 0.02
        return w, b

    params = {}
    params["embedding"] = (jax.random.normal(
        keys[0], (input_vocab_size, d_model), jnp.float32) * 0.02)

    layers = []
    for li in range(num_layers):
        lk = jax.random.split(keys[1 + li], 8)
        wq, bq = dense(lk[0], d_model, d_model)
        wk, bk = dense(lk[1], d_model, d_model)
        wv, bv = dense(lk[2], d_model, d_model)
        wo, bo = dense(lk[3], d_model, d_model)
        w1, b1 = dense(lk[4], d_model, dff)
        w2, b2 = dense(lk[5], dff, d_model)
        layers.append(dict(
            # Fused QKV weight (D, 3D), stored bf16 for the MXU path.
            wqkv=jnp.concatenate([wq, wk, wv], axis=1).astype(jnp.bfloat16),
            bqkv=jnp.concatenate([bq, bk, bv], axis=1),
            wo=wo.astype(jnp.bfloat16), bo=bo,
            ln1g=jnp.ones((1, d_model), jnp.float32),
            ln1b=jnp.zeros((1, d_model), jnp.float32),
            ln2g=jnp.ones((1, d_model), jnp.float32),
            ln2b=jnp.zeros((1, d_model), jnp.float32),
            w1=w1.astype(jnp.bfloat16), b1=b1,
            w2=w2.astype(jnp.bfloat16), b2=b2,
        ))
    params["layers"] = layers
    wf, bf = dense(keys[1 + num_layers], d_model, target_vocab_size)
    params["final_w"] = wf.astype(jnp.bfloat16)
    params["final_b"] = bf
    return params


def transformer_forward(tokens, params, num_heads, max_positional_encoding):
    B, S = tokens.shape
    D = params["embedding"].shape[1]
    # glue: embedding lookup + positional encoding (dropout == identity in eval)
    x = jnp.take(params["embedding"], tokens, axis=0)           # (B, S, D)
    pe = sinusoidal_positional_encoding(max_positional_encoding, D)
    x = x + pe[:S][None, :, :]

    for lp in params["layers"]:
        x = run_transformer_block(x, lp, num_heads)

    V = params["final_w"].shape[1]
    logits = run_final_linear(x.reshape(B * S, D),
                              params["final_w"], params["final_b"])
    return logits.reshape(B, S, V)


# ----------------------------------------------------------------------------
# Pure-JAX reference (f32 math, bf16-rounded weights) for a sanity check
# ----------------------------------------------------------------------------
def _ref_block(x, p, num_heads):
    B, S, D = x.shape
    dh = D // num_heads
    wqkv = p["wqkv"].astype(jnp.float32)
    qkv = jnp.einsum("bsd,de->bse", x, wqkv) + p["bqkv"]

    def split_heads(y):
        return y.reshape(B, S, num_heads, dh).transpose(0, 2, 1, 3)

    q = split_heads(qkv[..., :D])
    k = split_heads(qkv[..., D:2 * D])
    v = split_heads(qkv[..., 2 * D:])
    s = jnp.einsum("bhqd,bhkd->bhqk", q, k) / math.sqrt(dh)
    a = jax.nn.softmax(s, axis=-1)
    ctx = jnp.einsum("bhqk,bhkd->bhqd", a, v).transpose(0, 2, 1, 3).reshape(B, S, D)
    attn_out = jnp.einsum("bsd,de->bse", ctx, p["wo"].astype(jnp.float32)) + p["bo"]

    def ln(y, g, b):
        mu = jnp.mean(y, -1, keepdims=True)
        var = jnp.mean((y - mu) ** 2, -1, keepdims=True)
        return (y - mu) / jnp.sqrt(var + 1e-5) * g + b

    out1 = ln(x + attn_out, p["ln1g"], p["ln1b"])
    h = jax.nn.relu(jnp.einsum("bsd,df->bsf", out1,
                               p["w1"].astype(jnp.float32)) + p["b1"])
    ffn = jnp.einsum("bsf,fd->bsd", h, p["w2"].astype(jnp.float32)) + p["b2"]
    return ln(out1 + ffn, p["ln2g"], p["ln2b"])


def _ref_forward(tokens, params, num_heads, max_pos):
    B, S = tokens.shape
    D = params["embedding"].shape[1]
    x = jnp.take(params["embedding"], tokens, axis=0)
    x = x + sinusoidal_positional_encoding(max_pos, D)[:S][None]
    for lp in params["layers"]:
        x = _ref_block(x, lp, num_heads)
    return (jnp.einsum("bsd,dv->bsv", x, params["final_w"].astype(jnp.float32))
            + params["final_b"])


# ----------------------------------------------------------------------------
if __name__ == "__main__":
    num_layers = 2
    d_model = 32
    num_heads = 4
    dff = 64
    input_vocab_size = 50
    target_vocab_size = 40
    max_positional_encoding = 64
    B, S = 2, 8

    key = jax.random.PRNGKey(0)
    pkey, tkey = jax.random.split(key)
    params = init_params(pkey, num_layers, d_model, num_heads, dff,
                         input_vocab_size, target_vocab_size)
    tokens = jax.random.randint(tkey, (B, S), 0, input_vocab_size, dtype=jnp.int32)

    logits = transformer_forward(tokens, params, num_heads, max_positional_encoding)
    logits = jax.block_until_ready(logits)

    ref = _ref_forward(tokens, params, num_heads, max_positional_encoding)
    assert logits.shape == (B, S, target_vocab_size)
    # bf16 MXU inputs + approx reciprocal vs f32 reference -> loose tolerance.
    assert jnp.allclose(logits, ref, atol=3e-2, rtol=3e-2), "mismatch vs reference"

    print("KERNEL_OK")
</pallas_src>

<mosaic_0001>
module attributes {stable_mosaic.version = 11 : i64} {
  func.func @transformer_block_kernel(%arg0: i32, %arg1: memref<1x8x32xf32, #tpu.memory_space<vmem>>, %arg2: memref<32x96xbf16, #tpu.memory_space<vmem>>, %arg3: memref<1x96xf32, #tpu.memory_space<vmem>>, %arg4: memref<32x32xbf16, #tpu.memory_space<vmem>>, %arg5: memref<1x32xf32, #tpu.memory_space<vmem>>, %arg6: memref<1x32xf32, #tpu.memory_space<vmem>>, %arg7: memref<1x32xf32, #tpu.memory_space<vmem>>, %arg8: memref<1x32xf32, #tpu.memory_space<vmem>>, %arg9: memref<1x32xf32, #tpu.memory_space<vmem>>, %arg10: memref<32x64xbf16, #tpu.memory_space<vmem>>, %arg11: memref<1x64xf32, #tpu.memory_space<vmem>>, %arg12: memref<64x32xbf16, #tpu.memory_space<vmem>>, %arg13: memref<1x32xf32, #tpu.memory_space<vmem>>, %arg14: memref<1x8x32xf32, #tpu.memory_space<vmem>>) attributes {dimension_semantics = [#tpu.dimension_semantics<parallel>], iteration_bounds = array<i64: 2>, scalar_prefetch = 0 : i64, scratch_operands = 0 : i64, tpu.core_type = #tpu.core_type<tc>, window_params = [{transform_indices = @transform_0, window_bounds = array<i64: 1, 8, 32>}, {pipeline_mode = #tpu.pipeline_mode<synchronous>, transform_indices = @transform_1, window_bounds = array<i64: 32, 96>}, {pipeline_mode = #tpu.pipeline_mode<synchronous>, transform_indices = @transform_2, window_bounds = array<i64: 1, 96>}, {pipeline_mode = #tpu.pipeline_mode<synchronous>, transform_indices = @transform_3, window_bounds = array<i64: 32, 32>}, {pipeline_mode = #tpu.pipeline_mode<synchronous>, transform_indices = @transform_4, window_bounds = array<i64: 1, 32>}, {pipeline_mode = #tpu.pipeline_mode<synchronous>, transform_indices = @transform_5, window_bounds = array<i64: 1, 32>}, {pipeline_mode = #tpu.pipeline_mode<synchronous>, transform_indices = @transform_6, window_bounds = array<i64: 1, 32>}, {pipeline_mode = #tpu.pipeline_mode<synchronous>, transform_indices = @transform_7, window_bounds = array<i64: 1, 32>}, {pipeline_mode = #tpu.pipeline_mode<synchronous>, transform_indices = @transform_8, window_bounds = array<i64: 1, 32>}, {pipeline_mode = #tpu.pipeline_mode<synchronous>, transform_indices = @transform_9, window_bounds = array<i64: 32, 64>}, {pipeline_mode = #tpu.pipeline_mode<synchronous>, transform_indices = @transform_10, window_bounds = array<i64: 1, 64>}, {pipeline_mode = #tpu.pipeline_mode<synchronous>, transform_indices = @transform_11, window_bounds = array<i64: 64, 32>}, {pipeline_mode = #tpu.pipeline_mode<synchronous>, transform_indices = @transform_12, window_bounds = array<i64: 1, 32>}, {transform_indices = @transform_13, window_bounds = array<i64: 1, 8, 32>}]} {
    %c0 = arith.constant 0 : index
    %c0_0 = arith.constant 0 : index
    %c0_1 = arith.constant 0 : index
    %0 = vector.load %arg1[%c0, %c0_0, %c0_1] : memref<1x8x32xf32, #tpu.memory_space<vmem>>, vector<1x8x32xf32>
    %1 = vector.shape_cast %0 : vector<1x8x32xf32> to vector<8x32xf32>
    %2 = arith.truncf %1 : vector<8x32xf32> to vector<8x32xbf16>
    %c0_2 = arith.constant 0 : index
    %c0_3 = arith.constant 0 : index
    %3 = vector.load %arg2[%c0_2, %c0_3] : memref<32x96xbf16, #tpu.memory_space<vmem>>, vector<32x96xbf16>
    %cst = arith.constant dense<0.000000e+00> : vector<8x96xf32>
    %4 = tpu.matmul %2, %3, %cst {dimension_numbers = #tpu.dot_dimension_numbers<[1], [0], [0], [1], [0, 0, 1, 1], [], []>} : vector<8x32xbf16>, vector<32x96xbf16>, vector<8x96xf32> -> vector<8x96xf32>
    %c0_4 = arith.constant 0 : index
    %c0_5 = arith.constant 0 : index
    %5 = vector.load %arg3[%c0_4, %c0_5] : memref<1x96xf32, #tpu.memory_space<vmem>>, vector<1x96xf32>
    %6 = vector.broadcast %5 : vector<1x96xf32> to vector<8x96xf32>
    %7 = arith.addf %4, %6 : vector<8x96xf32>
    %8 = vector.extract_strided_slice %7 {offsets = [0, 0], sizes = [8, 32], strides = [1, 1]} : vector<8x96xf32> to vector<8x32xf32>
    %cst_6 = arith.constant 0.353553385 : f32
    %9 = vector.broadcast %cst_6 : f32 to vector<8x32xf32>
    %10 = arith.mulf %8, %9 : vector<8x32xf32>
    %11 = vector.extract_strided_slice %7 {offsets = [0, 32], sizes = [8, 32], strides = [1, 1]} : vector<8x96xf32> to vector<8x32xf32>
    %12 = vector.extract_strided_slice %7 {offsets = [0, 64], sizes = [8, 32], strides = [1, 1]} : vector<8x96xf32> to vector<8x32xf32>
    %13 = arith.truncf %10 : vector<8x32xf32> to vector<8x32xbf16>
    %14 = arith.truncf %11 : vector<8x32xf32> to vector<8x32xbf16>
    %15 = arith.truncf %12 : vector<8x32xf32> to vector<8x32xbf16>
    %16 = vector.extract_strided_slice %13 {offsets = [0, 0], sizes = [8, 8], strides = [1, 1]} : vector<8x32xbf16> to vector<8x8xbf16>
    %17 = vector.extract_strided_slice %14 {offsets = [0, 0], sizes = [8, 8], strides = [1, 1]} : vector<8x32xbf16> to vector<8x8xbf16>
    %18 = vector.extract_strided_slice %15 {offsets = [0, 0], sizes = [8, 8], strides = [1, 1]} : vector<8x32xbf16> to vector<8x8xbf16>
    %cst_7 = arith.constant dense<0.000000e+00> : vector<8x8xf32>
    %19 = tpu.matmul %16, %17, %cst_7 {dimension_numbers = #tpu.dot_dimension_numbers<[1], [1], [0], [0], [0, 0, 1, 0], [], []>} : vector<8x8xbf16>, vector<8x8xbf16>, vector<8x8xf32> -> vector<8x8xf32>
    %cst_8 = arith.constant dense<0xFF800000> : vector<8xf32>
    %20 = vector.multi_reduction <maximumf>, %19, %cst_8 [1] : vector<8x8xf32> to vector<8xf32>
    %21 = vector.shape_cast %20 : vector<8xf32> to vector<8x1xf32>
    %22 = vector.broadcast %21 : vector<8x1xf32> to vector<8x8xf32>
    %23 = arith.subf %19, %22 : vector<8x8xf32>
    %24 = math.exp %23 : vector<8x8xf32>
    %cst_9 = arith.constant dense<0.000000e+00> : vector<8xf32>
    %25 = vector.multi_reduction <add>, %24, %cst_9 [1] : vector<8x8xf32> to vector<8xf32>
    %26 = vector.shape_cast %25 : vector<8xf32> to vector<8x1xf32>
    %27 = tpu.reciprocal %26 {approx = true} : vector<8x1xf32> -> vector<8x1xf32>
    %28 = vector.broadcast %27 : vector<8x1xf32> to vector<8x8xf32>
    %29 = arith.mulf %24, %28 : vector<8x8xf32>
    %30 = arith.truncf %29 : vector<8x8xf32> to vector<8x8xbf16>
    %cst_10 = arith.constant dense<0.000000e+00> : vector<8x8xf32>
    %31 = tpu.matmul %30, %18, %cst_10 {dimension_numbers = #tpu.dot_dimension_numbers<[1], [0], [0], [1], [0, 0, 1, 1], [], []>} : vector<8x8xbf16>, vector<8x8xbf16>, vector<8x8xf32> -> vector<8x8xf32>
    %32 = vector.extract_strided_slice %13 {offsets = [0, 8], sizes = [8, 8], strides = [1, 1]} : vector<8x32xbf16> to vector<8x8xbf16>
    %33 = vector.extract_strided_slice %14 {offsets = [0, 8], sizes = [8, 8], strides = [1, 1]} : vector<8x32xbf16> to vector<8x8xbf16>
    %34 = vector.extract_strided_slice %15 {offsets = [0, 8], sizes = [8, 8], strides = [1, 1]} : vector<8x32xbf16> to vector<8x8xbf16>
    %cst_11 = arith.constant dense<0.000000e+00> : vector<8x8xf32>
    %35 = tpu.matmul %32, %33, %cst_11 {dimension_numbers = #tpu.dot_dimension_numbers<[1], [1], [0], [0], [0, 0, 1, 0], [], []>} : vector<8x8xbf16>, vector<8x8xbf16>, vector<8x8xf32> -> vector<8x8xf32>
    %cst_12 = arith.constant dense<0xFF800000> : vector<8xf32>
    %36 = vector.multi_reduction <maximumf>, %35, %cst_12 [1] : vector<8x8xf32> to vector<8xf32>
    %37 = vector.shape_cast %36 : vector<8xf32> to vector<8x1xf32>
    %38 = vector.broadcast %37 : vector<8x1xf32> to vector<8x8xf32>
    %39 = arith.subf %35, %38 : vector<8x8xf32>
    %40 = math.exp %39 : vector<8x8xf32>
    %cst_13 = arith.constant dense<0.000000e+00> : vector<8xf32>
    %41 = vector.multi_reduction <add>, %40, %cst_13 [1] : vector<8x8xf32> to vector<8xf32>
    %42 = vector.shape_cast %41 : vector<8xf32> to vector<8x1xf32>
    %43 = tpu.reciprocal %42 {approx = true} : vector<8x1xf32> -> vector<8x1xf32>
    %44 = vector.broadcast %43 : vector<8x1xf32> to vector<8x8xf32>
    %45 = arith.mulf %40, %44 : vector<8x8xf32>
    %46 = arith.truncf %45 : vector<8x8xf32> to vector<8x8xbf16>
    %cst_14 = arith.constant dense<0.000000e+00> : vector<8x8xf32>
    %47 = tpu.matmul %46, %34, %cst_14 {dimension_numbers = #tpu.dot_dimension_numbers<[1], [0], [0], [1], [0, 0, 1, 1], [], []>} : vector<8x8xbf16>, vector<8x8xbf16>, vector<8x8xf32> -> vector<8x8xf32>
    %48 = vector.extract_strided_slice %13 {offsets = [0, 16], sizes = [8, 8], strides = [1, 1]} : vector<8x32xbf16> to vector<8x8xbf16>
    %49 = vector.extract_strided_slice %14 {offsets = [0, 16], sizes = [8, 8], strides = [1, 1]} : vector<8x32xbf16> to vector<8x8xbf16>
    %50 = vector.extract_strided_slice %15 {offsets = [0, 16], sizes = [8, 8], strides = [1, 1]} : vector<8x32xbf16> to vector<8x8xbf16>
    %cst_15 = arith.constant dense<0.000000e+00> : vector<8x8xf32>
    %51 = tpu.matmul %48, %49, %cst_15 {dimension_numbers = #tpu.dot_dimension_numbers<[1], [1], [0], [0], [0, 0, 1, 0], [], []>} : vector<8x8xbf16>, vector<8x8xbf16>, vector<8x8xf32> -> vector<8x8xf32>
    %cst_16 = arith.constant dense<0xFF800000> : vector<8xf32>
    %52 = vector.multi_reduction <maximumf>, %51, %cst_16 [1] : vector<8x8xf32> to vector<8xf32>
    %53 = vector.shape_cast %52 : vector<8xf32> to vector<8x1xf32>
    %54 = vector.broadcast %53 : vector<8x1xf32> to vector<8x8xf32>
    %55 = arith.subf %51, %54 : vector<8x8xf32>
    %56 = math.exp %55 : vector<8x8xf32>
    %cst_17 = arith.constant dense<0.000000e+00> : vector<8xf32>
    %57 = vector.multi_reduction <add>, %56, %cst_17 [1] : vector<8x8xf32> to vector<8xf32>
    %58 = vector.shape_cast %57 : vector<8xf32> to vector<8x1xf32>
    %59 = tpu.reciprocal %58 {approx = true} : vector<8x1xf32> -> vector<8x1xf32>
    %60 = vector.broadcast %59 : vector<8x1xf32> to vector<8x8xf32>
    %61 = arith.mulf %56, %60 : vector<8x8xf32>
    %62 = arith.truncf %61 : vector<8x8xf32> to vector<8x8xbf16>
    %cst_18 = arith.constant dense<0.000000e+00> : vector<8x8xf32>
    %63 = tpu.matmul %62, %50, %cst_18 {dimension_numbers = #tpu.dot_dimension_numbers<[1], [0], [0], [1], [0, 0, 1, 1], [], []>} : vector<8x8xbf16>, vector<8x8xbf16>, vector<8x8xf32> -> vector<8x8xf32>
    %64 = vector.extract_strided_slice %13 {offsets = [0, 24], sizes = [8, 8], strides = [1, 1]} : vector<8x32xbf16> to vector<8x8xbf16>
    %65 = vector.extract_strided_slice %14 {offsets = [0, 24], sizes = [8, 8], strides = [1, 1]} : vector<8x32xbf16> to vector<8x8xbf16>
    %66 = vector.extract_strided_slice %15 {offsets = [0, 24], sizes = [8, 8], strides = [1, 1]} : vector<8x32xbf16> to vector<8x8xbf16>
    %cst_19 = arith.constant dense<0.000000e+00> : vector<8x8xf32>
    %67 = tpu.matmul %64, %65, %cst_19 {dimension_numbers = #tpu.dot_dimension_numbers<[1], [1], [0], [0], [0, 0, 1, 0], [], []>} : vector<8x8xbf16>, vector<8x8xbf16>, vector<8x8xf32> -> vector<8x8xf32>
    %cst_20 = arith.constant dense<0xFF800000> : vector<8xf32>
    %68 = vector.multi_reduction <maximumf>, %67, %cst_20 [1] : vector<8x8xf32> to vector<8xf32>
    %69 = vector.shape_cast %68 : vector<8xf32> to vector<8x1xf32>
    %70 = vector.broadcast %69 : vector<8x1xf32> to vector<8x8xf32>
    %71 = arith.subf %67, %70 : vector<8x8xf32>
    %72 = math.exp %71 : vector<8x8xf32>
    %cst_21 = arith.constant dense<0.000000e+00> : vector<8xf32>
    %73 = vector.multi_reduction <add>, %72, %cst_21 [1] : vector<8x8xf32> to vector<8xf32>
    %74 = vector.shape_cast %73 : vector<8xf32> to vector<8x1xf32>
    %75 = tpu.reciprocal %74 {approx = true} : vector<8x1xf32> -> vector<8x1xf32>
    %76 = vector.broadcast %75 : vector<8x1xf32> to vector<8x8xf32>
    %77 = arith.mulf %72, %76 : vector<8x8xf32>
    %78 = arith.truncf %77 : vector<8x8xf32> to vector<8x8xbf16>
    %cst_22 = arith.constant dense<0.000000e+00> : vector<8x8xf32>
    %79 = tpu.matmul %78, %66, %cst_22 {dimension_numbers = #tpu.dot_dimension_numbers<[1], [0], [0], [1], [0, 0, 1, 1], [], []>} : vector<8x8xbf16>, vector<8x8xbf16>, vector<8x8xf32> -> vector<8x8xf32>
    %80 = tpu.concatenate %31, %47, %63, %79 in 1 : vector<8x8xf32>, vector<8x8xf32>, vector<8x8xf32>, vector<8x8xf32> -> vector<8x32xf32>
    %81 = arith.truncf %80 : vector<8x32xf32> to vector<8x32xbf16>
    %c0_23 = arith.constant 0 : index
    %c0_24 = arith.constant 0 : index
    %82 = vector.load %arg4[%c0_23, %c0_24] : memref<32x32xbf16, #tpu.memory_space<vmem>>, vector<32x32xbf16>
    %cst_25 = arith.constant dense<0.000000e+00> : vector<8x32xf32>
    %83 = tpu.matmul %81, %82, %cst_25 {dimension_numbers = #tpu.dot_dimension_numbers<[1], [0], [0], [1], [0, 0, 1, 1], [], []>} : vector<8x32xbf16>, vector<32x32xbf16>, vector<8x32xf32> -> vector<8x32xf32>
    %c0_26 = arith.constant 0 : index
    %c0_27 = arith.constant 0 : index
    %84 = vector.load %arg5[%c0_26, %c0_27] : memref<1x32xf32, #tpu.memory_space<vmem>>, vector<1x32xf32>
    %85 = vector.broadcast %84 : vector<1x32xf32> to vector<8x32xf32>
    %86 = arith.addf %83, %85 : vector<8x32xf32>
    %87 = arith.addf %1, %86 : vector<8x32xf32>
    %c0_28 = arith.constant 0 : index
    %c0_29 = arith.constant 0 : index
    %88 = vector.load %arg6[%c0_28, %c0_29] : memref<1x32xf32, #tpu.memory_space<vmem>>, vector<1x32xf32>
    %c0_30 = arith.constant 0 : index
    %c0_31 = arith.constant 0 : index
    %89 = vector.load %arg7[%c0_30, %c0_31] : memref<1x32xf32, #tpu.memory_space<vmem>>, vector<1x32xf32>
    %cst_32 = arith.constant dense<0.000000e+00> : vector<8xf32>
    %90 = vector.multi_reduction <add>, %87, %cst_32 [1] : vector<8x32xf32> to vector<8xf32>
    %91 = vector.shape_cast %90 : vector<8xf32> to vector<8x1xf32>
    %cst_33 = arith.constant 3.200000e+01 : f32
    %92 = vector.broadcast %cst_33 : f32 to vector<8x1xf32>
    %93 = arith.divf %91, %92 : vector<8x1xf32>
    %94 = vector.broadcast %93 : vector<8x1xf32> to vector<8x32xf32>
    %95 = arith.subf %87, %94 : vector<8x32xf32>
    %96 = arith.mulf %95, %95 : vector<8x32xf32>
    %cst_34 = arith.constant dense<0.000000e+00> : vector<8xf32>
    %97 = vector.multi_reduction <add>, %96, %cst_34 [1] : vector<8x32xf32> to vector<8xf32>
    %98 = vector.shape_cast %97 : vector<8xf32> to vector<8x1xf32>
    %cst_35 = arith.constant 3.200000e+01 : f32
    %99 = vector.broadcast %cst_35 : f32 to vector<8x1xf32>
    %100 = arith.divf %98, %99 : vector<8x1xf32>
    %101 = vector.broadcast %93 : vector<8x1xf32> to vector<8x32xf32>
    %102 = arith.subf %87, %101 : vector<8x32xf32>
    %cst_36 = arith.constant 9.99999974E-6 : f32
    %103 = vector.broadcast %cst_36 : f32 to vector<8x1xf32>
    %104 = arith.addf %100, %103 : vector<8x1xf32>
    %105 = math.rsqrt %104 : vector<8x1xf32>
    %106 = vector.broadcast %105 : vector<8x1xf32> to vector<8x32xf32>
    %107 = arith.mulf %102, %106 : vector<8x32xf32>
    %108 = vector.broadcast %88 : vector<1x32xf32> to vector<8x32xf32>
    %109 = arith.mulf %107, %108 : vector<8x32xf32>
    %110 = vector.broadcast %89 : vector<1x32xf32> to vector<8x32xf32>
    %111 = arith.addf %109, %110 : vector<8x32xf32>
    %112 = arith.truncf %111 : vector<8x32xf32> to vector<8x32xbf16>
    %c0_37 = arith.constant 0 : index
    %c0_38 = arith.constant 0 : index
    %113 = vector.load %arg10[%c0_37, %c0_38] : memref<32x64xbf16, #tpu.memory_space<vmem>>, vector<32x64xbf16>
    %cst_39 = arith.constant dense<0.000000e+00> : vector<8x64xf32>
    %114 = tpu.matmul %112, %113, %cst_39 {dimension_numbers = #tpu.dot_dimension_numbers<[1], [0], [0], [1], [0, 0, 1, 1], [], []>} : vector<8x32xbf16>, vector<32x64xbf16>, vector<8x64xf32> -> vector<8x64xf32>
    %c0_40 = arith.constant 0 : index
    %c0_41 = arith.constant 0 : index
    %115 = vector.load %arg11[%c0_40, %c0_41] : memref<1x64xf32, #tpu.memory_space<vmem>>, vector<1x64xf32>
    %116 = vector.broadcast %115 : vector<1x64xf32> to vector<8x64xf32>
    %117 = arith.addf %114, %116 : vector<8x64xf32>
    %cst_42 = arith.constant 0.000000e+00 : f32
    %118 = vector.broadcast %cst_42 : f32 to vector<8x64xf32>
    %119 = arith.maximumf %117, %118 : vector<8x64xf32>
    %120 = arith.truncf %119 : vector<8x64xf32> to vector<8x64xbf16>
    %c0_43 = arith.constant 0 : index
    %c0_44 = arith.constant 0 : index
    %121 = vector.load %arg12[%c0_43, %c0_44] : memref<64x32xbf16, #tpu.memory_space<vmem>>, vector<64x32xbf16>
    %cst_45 = arith.constant dense<0.000000e+00> : vector<8x32xf32>
    %122 = tpu.matmul %120, %121, %cst_45 {dimension_numbers = #tpu.dot_dimension_numbers<[1], [0], [0], [1], [0, 0, 1, 1], [], []>} : vector<8x64xbf16>, vector<64x32xbf16>, vector<8x32xf32> -> vector<8x32xf32>
    %c0_46 = arith.constant 0 : index
    %c0_47 = arith.constant 0 : index
    %123 = vector.load %arg13[%c0_46, %c0_47] : memref<1x32xf32, #tpu.memory_space<vmem>>, vector<1x32xf32>
    %124 = vector.broadcast %123 : vector<1x32xf32> to vector<8x32xf32>
    %125 = arith.addf %122, %124 : vector<8x32xf32>
    %126 = arith.addf %111, %125 : vector<8x32xf32>
    %c0_48 = arith.constant 0 : index
    %c0_49 = arith.constant 0 : index
    %127 = vector.load %arg8[%c0_48, %c0_49] : memref<1x32xf32, #tpu.memory_space<vmem>>, vector<1x32xf32>
    %c0_50 = arith.constant 0 : index
    %c0_51 = arith.constant 0 : index
    %128 = vector.load %arg9[%c0_50, %c0_51] : memref<1x32xf32, #tpu.memory_space<vmem>>, vector<1x32xf32>
    %cst_52 = arith.constant dense<0.000000e+00> : vector<8xf32>
    %129 = vector.multi_reduction <add>, %126, %cst_52 [1] : vector<8x32xf32> to vector<8xf32>
    %130 = vector.shape_cast %129 : vector<8xf32> to vector<8x1xf32>
    %cst_53 = arith.constant 3.200000e+01 : f32
    %131 = vector.broadcast %cst_53 : f32 to vector<8x1xf32>
    %132 = arith.divf %130, %131 : vector<8x1xf32>
    %133 = vector.broadcast %132 : vector<8x1xf32> to vector<8x32xf32>
    %134 = arith.subf %126, %133 : vector<8x32xf32>
    %135 = arith.mulf %134, %134 : vector<8x32xf32>
    %cst_54 = arith.constant dense<0.000000e+00> : vector<8xf32>
    %136 = vector.multi_reduction <add>, %135, %cst_54 [1] : vector<8x32xf32> to vector<8xf32>
    %137 = vector.shape_cast %136 : vector<8xf32> to vector<8x1xf32>
    %cst_55 = arith.constant 3.200000e+01 : f32
    %138 = vector.broadcast %cst_55 : f32 to vector<8x1xf32>
    %139 = arith.divf %137, %138 : vector<8x1xf32>
    %140 = vector.broadcast %132 : vector<8x1xf32> to vector<8x32xf32>
    %141 = arith.subf %126, %140 : vector<8x32xf32>
    %cst_56 = arith.constant 9.99999974E-6 : f32
    %142 = vector.broadcast %cst_56 : f32 to vector<8x1xf32>
    %143 = arith.addf %139, %142 : vector<8x1xf32>
    %144 = math.rsqrt %143 : vector<8x1xf32>
    %145 = vector.broadcast %144 : vector<8x1xf32> to vector<8x32xf32>
    %146 = arith.mulf %141, %145 : vector<8x32xf32>
    %147 = vector.broadcast %127 : vector<1x32xf32> to vector<8x32xf32>
    %148 = arith.mulf %146, %147 : vector<8x32xf32>
    %149 = vector.broadcast %128 : vector<1x32xf32> to vector<8x32xf32>
    %150 = arith.addf %148, %149 : vector<8x32xf32>
    %c0_57 = arith.constant 0 : index
    %c0_58 = arith.constant 0 : index
    %c0_59 = arith.constant 0 : index
    %151 = vector.load %arg14[%c0_57, %c0_58, %c0_59] : memref<1x8x32xf32, #tpu.memory_space<vmem>>, vector<1x8x32xf32>
    %152 = vector.shape_cast %151 : vector<1x8x32xf32> to vector<8x32xf32>
    %153 = vector.shape_cast %150 : vector<8x32xf32> to vector<1x8x32xf32>
    tpu.vector_store %arg14[%c0_57, %c0_58, %c0_59], %153 {strides = array<i32>} : memref<1x8x32xf32, #tpu.memory_space<vmem>>, vector<1x8x32xf32>,
    return
  }
  func.func @transform_0(%arg0: i32) -> (i32, i32, i32) {
    %c0_i32 = arith.constant 0 : i32
    %c0_i32_0 = arith.constant 0 : i32
    %c0_i32_1 = arith.constant 0 : i32
    return %arg0, %c0_i32, %c0_i32_0 : i32, i32, i32
  }
  func.func @transform_1(%arg0: i32) -> (i32, i32) {
    %c0_i32 = arith.constant 0 : i32
    %c0_i32_0 = arith.constant 0 : i32
    %c0_i32_1 = arith.constant 0 : i32
    return %c0_i32, %c0_i32_0 : i32, i32
  }
  func.func @transform_2(%arg0: i32) -> (i32, i32) {
    %c0_i32 = arith.constant 0 : i32
    %c0_i32_0 = arith.constant 0 : i32
    %c0_i32_1 = arith.constant 0 : i32
    return %c0_i32, %c0_i32_0 : i32, i32
  }
  func.func @transform_3(%arg0: i32) -> (i32, i32) {
    %c0_i32 = arith.constant 0 : i32
    %c0_i32_0 = arith.constant 0 : i32
    %c0_i32_1 = arith.constant 0 : i32
    return %c0_i32, %c0_i32_0 : i32, i32
  }
  func.func @transform_4(%arg0: i32) -> (i32, i32) {
    %c0_i32 = arith.constant 0 : i32
    %c0_i32_0 = arith.constant 0 : i32
    %c0_i32_1 = arith.constant 0 : i32
    return %c0_i32, %c0_i32_0 : i32, i32
  }
  func.func @transform_5(%arg0: i32) -> (i32, i32) {
    %c0_i32 = arith.constant 0 : i32
    %c0_i32_0 = arith.constant 0 : i32
    %c0_i32_1 = arith.constant 0 : i32
    return %c0_i32, %c0_i32_0 : i32, i32
  }
  func.func @transform_6(%arg0: i32) -> (i32, i32) {
    %c0_i32 = arith.constant 0 : i32
    %c0_i32_0 = arith.constant 0 : i32
    %c0_i32_1 = arith.constant 0 : i32
    return %c0_i32, %c0_i32_0 : i32, i32
  }
  func.func @transform_7(%arg0: i32) -> (i32, i32) {
    %c0_i32 = arith.constant 0 : i32
    %c0_i32_0 = arith.constant 0 : i32
    %c0_i32_1 = arith.constant 0 : i32
    return %c0_i32, %c0_i32_0 : i32, i32
  }
  func.func @transform_8(%arg0: i32) -> (i32, i32) {
    %c0_i32 = arith.constant 0 : i32
    %c0_i32_0 = arith.constant 0 : i32
    %c0_i32_1 = arith.constant 0 : i32
    return %c0_i32, %c0_i32_0 : i32, i32
  }
  func.func @transform_9(%arg0: i32) -> (i32, i32) {
    %c0_i32 = arith.constant 0 : i32
    %c0_i32_0 = arith.constant 0 : i32
    %c0_i32_1 = arith.constant 0 : i32
    return %c0_i32, %c0_i32_0 : i32, i32
  }
  func.func @transform_10(%arg0: i32) -> (i32, i32) {
    %c0_i32 = arith.constant 0 : i32
    %c0_i32_0 = arith.constant 0 : i32
    %c0_i32_1 = arith.constant 0 : i32
    return %c0_i32, %c0_i32_0 : i32, i32
  }
  func.func @transform_11(%arg0: i32) -> (i32, i32) {
    %c0_i32 = arith.constant 0 : i32
    %c0_i32_0 = arith.constant 0 : i32
    %c0_i32_1 = arith.constant 0 : i32
    return %c0_i32, %c0_i32_0 : i32, i32
  }
  func.func @transform_12(%arg0: i32) -> (i32, i32) {
    %c0_i32 = arith.constant 0 : i32
    %c0_i32_0 = arith.constant 0 : i32
    %c0_i32_1 = arith.constant 0 : i32
    return %c0_i32, %c0_i32_0 : i32, i32
  }
  func.func @transform_13(%arg0: i32) -> (i32, i32, i32) {
    %c0_i32 = arith.constant 0 : i32
    %c0_i32_0 = arith.constant 0 : i32
    %c0_i32_1 = arith.constant 0 : i32
    return %arg0, %c0_i32, %c0_i32_0 : i32, i32, i32
  }
}

</mosaic_0001>

<llo_original>
// kernel: tpu_custom_call.1
$region0: #{tpu_custom_call.1}
  #allocation0 [shape = 'u32[]', space=smem, size = 0x4, offset = 0x4, fixed_abs, tag = 'smem constant byte address 0x4 - core index']
  #allocation1 [shape = 'u32[144,128]{1,0:T(1,128)}', space=vmem, size = 0x12000, scoped, tag = 'internal scratch']
  %s0 = inlined_call_operand.vmem [shape: f32[2,8,32], index: 0, kind: input, shape index: {}]
  %s1 = inlined_call_operand.vmem [shape: bf16[32,96], index: 1, kind: input, shape index: {}]
  %s2 = inlined_call_operand.vmem [shape: f32[1,96], index: 2, kind: input, shape index: {}]
  %s3 = inlined_call_operand.vmem [shape: bf16[32,32], index: 3, kind: input, shape index: {}]
  %s4 = inlined_call_operand.vmem [shape: f32[1,32], index: 4, kind: input, shape index: {}]
  %s5 = inlined_call_operand.hbm [shape: f32[1,32], index: 5, kind: input, shape index: {}]
  %s6 = inlined_call_operand.hbm [shape: f32[1,32], index: 6, kind: input, shape index: {}]
  %s7 = inlined_call_operand.hbm [shape: f32[1,32], index: 7, kind: input, shape index: {}]
  %s8 = inlined_call_operand.hbm [shape: f32[1,32], index: 8, kind: input, shape index: {}]
  %s9 = inlined_call_operand.vmem [shape: bf16[32,64], index: 9, kind: input, shape index: {}]
  %s10 = inlined_call_operand.vmem [shape: f32[1,64], index: 10, kind: input, shape index: {}]
  %s11 = inlined_call_operand.vmem [shape: bf16[64,32], index: 11, kind: input, shape index: {}]
  %s12 = inlined_call_operand.vmem [shape: f32[1,32], index: 12, kind: input, shape index: {}]
  %s13 = inlined_call_operand.hbm [shape: f32[2,8,32], index: 13, kind: output, shape index: {}]
  %s14 = sld [smem:[#allocation0]]
  $region101: #{tpu_custom_call.1} parent=0
    _
  %s16 = ssub.s32 1, %s14
  %s17 = scalar_select 0, %s16, %s14
  $region1: #{tpu_custom_call.1} parent=0
    #allocation2 [shape = 'u8[512]{0}', space=vmem, size = 0x400, scoped, tag = 'input window, operand 5, single buffered']
    #allocation3 [shape = 's32[2]{0}', space=sflag, size = 0x8, scoped, tag = 'scoped memory for tpu_custom_call.1']
    #allocation4 [shape = 's32[2]{0}', space=sflag, size = 0x8, scoped, tag = 'scoped memory for tpu_custom_call.1']
    #allocation5 [shape = 'u8[512]{0}', space=vmem, size = 0x400, scoped, tag = 'input window, operand 6, single buffered']
    #allocation6 [shape = 's32[1]{0}', space=sflag, size = 0x4, scoped, tag = 'scoped memory for tpu_custom_call.1']
    #allocation7 [shape = 'u8[512]{0}', space=vmem, size = 0x400, scoped, tag = 'input window, operand 7, single buffered']
    #allocation8 [shape = 'u8[512]{0}', space=vmem, size = 0x400, scoped, tag = 'input window, operand 8, single buffered']
    #allocation9 [shape = 's32[1]{0}', space=sflag, size = 0x4, scoped, tag = 'scoped memory for tpu_custom_call.1']
    #allocation10 [shape = 'u8[8192]{0}', space=vmem, size = 0x2000, scoped, tag = 'output window, operand 0']
    %18 = vsyncpa [#allocation3], 0
    %19 = vsyncpa [#allocation6], 0
    %20 = vsyncpa [#allocation9], 0
    %21 = vsyncpa [#allocation4], 0
    %s22 = scalar_lea.sflag [#allocation4], 1
    %23 = vsyncpa %s22, 0
    loop: start=0, step=1, limit=4
    $region2: #{tpu_custom_call.1} parent=1 // loop_pre_header
      _
    $region3: #{tpu_custom_call.1} parent=1 // loop_header
      %s25 = sphi 0, %s29
      %p26 = scmp.ge.s32.totalorder %s25, 4
      %s35 = sphi 0, %s37
      %s38 = sphi 0, %s35
      %s39 = sphi 0, %s38
      %s55 = sphi 0, %s39
      %s59 = sphi 0, %s59
      %s61 = sphi 0, %s59
      %s62 = sphi 0, %s61
      %s76 = sphi 0, %s62
      %s80 = sphi 0, %s80
      %s82 = sphi 0, %s80
      %s83 = sphi 0, %s82
      %s97 = sphi 0, %s83
      %s101 = sphi 0, %s101
      %s103 = sphi 0, %s101
      %s104 = sphi 0, %s103
      %s118 = sphi 0, %s104
      %s122 = sphi 0, %s122
      %s124 = sphi 0, %s122
      %s125 = sphi 0, %s124
      %s139 = sphi 0, %s125
      %s143 = sphi 0, %s143
      %s145 = sphi 0, %s143
      %s146 = sphi 0, %s145
      %s160 = sphi 0, %s146
      %s164 = sphi 0, %s164
      %s166 = sphi 0, %s164
      %s167 = sphi 0, %s166
      %s181 = sphi 0, %s167
      %s185 = sphi 0, %s185
      %s187 = sphi 0, %s185
      %s188 = sphi 0, %s187
      %s202 = sphi 0, %s188
      %s206 = sphi 0, %s206
      %s208 = sphi 0, %s206
      %s209 = sphi 0, %s208
      %s223 = sphi 0, %s209
      %s227 = sphi 0, %s227
      %s229 = sphi 0, %s227
      %s230 = sphi 0, %s229
      %s244 = sphi 0, %s230
      %s248 = sphi 0, %s248
      %s250 = sphi 0, %s248
      %s251 = sphi 0, %s250
      %s265 = sphi 0, %s251
      %s269 = sphi 0, %s269
      %s271 = sphi 0, %s269
      %s272 = sphi 0, %s271
      %s286 = sphi 0, %s272
      %s290 = sphi 0, %s290
      %s292 = sphi 0, %s290
      %s293 = sphi 0, %s292
      %s307 = sphi 0, %s293
      %s313 = sphi 0, %s315
      %s316 = sphi 0, %s313
      %s317 = sphi 0, %s316
      %s333 = sphi 0, %s317
    $region4: #{tpu_custom_call.1} parent=1 // loop_header_branch
      %28 = sbr.rel (%p26) target = $region8
    $region5: #{tpu_custom_call.1} parent=1 // loop_body
      %s30 = ssub.s32 %s25, 1
      %s31 = ssub.s32 %s25, 2
      %s32 = sadd.s32 %s25, 1
      %s33 = ssub.s32 %s25, %s32
      %p34 = scmp.eq.s32.totalorder %s33, 0
      %s36 = sadd.s32 %s35, 1
      %s37 = scalar_select %p34, %s35, %s36
      %p40 = pneg %p34
      %p41 = scmp.eq.s32.totalorder %s25, 1
      %p42 = por %p40, %p41
      %p43 = scmp.ne.s32.totalorder %s35, %s38
      %p44 = scmp.eq.s32.totalorder %s25, 0
      %p45 = por %p43, %p44
      %p46 = scmp.ne.s32.totalorder %s35, %s38
      %p47 = scmp.eq.s32.totalorder %s30, 1
      %p48 = por %p46, %p47
      %p49 = scmp.ne.s32.totalorder %s38, %s39
      %p50 = scmp.eq.s32.totalorder %s30, 0
      %p51 = por %p49, %p50
      %p52 = scmp.ne.s32.totalorder %s38, %s39
      %p53 = scmp.eq.s32.totalorder %s31, 1
      %p54 = por %p52, %p53
      %p56 = scmp.ne.s32.totalorder %s39, %s55
      %p57 = scmp.eq.s32.totalorder %s31, 0
      %p58 = por %p56, %p57
      %s60 = sadd.s32 %s59, 1
      %p63 = scmp.eq.s32.totalorder %s25, 1
      %p64 = scmp.ne.s32.totalorder %s59, %s61
      %p65 = scmp.eq.s32.totalorder %s25, 0
      %p66 = por %p64, %p65
      %p67 = scmp.ne.s32.totalorder %s59, %s61
      %p68 = scmp.eq.s32.totalorder %s30, 1
      %p69 = por %p67, %p68
      %p70 = scmp.ne.s32.totalorder %s61, %s62
      %p71 = scmp.eq.s32.totalorder %s30, 0
      %p72 = por %p70, %p71
      %p73 = scmp.ne.s32.totalorder %s61, %s62
      %p74 = scmp.eq.s32.totalorder %s31, 1
      %p75 = por %p73, %p74
      %p77 = scmp.ne.s32.totalorder %s62, %s76
      %p78 = scmp.eq.s32.totalorder %s31, 0
      %p79 = por %p77, %p78
      %s81 = sadd.s32 %s80, 1
      %p84 = scmp.eq.s32.totalorder %s25, 1
      %p85 = scmp.ne.s32.totalorder %s80, %s82
      %p86 = scmp.eq.s32.totalorder %s25, 0
      %p87 = por %p85, %p86
      %p88 = scmp.ne.s32.totalorder %s80, %s82
      %p89 = scmp.eq.s32.totalorder %s30, 1
      %p90 = por %p88, %p89
      %p91 = scmp.ne.s32.totalorder %s82, %s83
      %p92 = scmp.eq.s32.totalorder %s30, 0
      %p93 = por %p91, %p92
      %p94 = scmp.ne.s32.totalorder %s82, %s83
      %p95 = scmp.eq.s32.totalorder %s31, 1
      %p96 = por %p94, %p95
      %p98 = scmp.ne.s32.totalorder %s83, %s97
      %p99 = scmp.eq.s32.totalorder %s31, 0
      %p100 = por %p98, %p99
      %s102 = sadd.s32 %s101, 1
      %p105 = scmp.eq.s32.totalorder %s25, 1
      %p106 = scmp.ne.s32.totalorder %s101, %s103
      %p107 = scmp.eq.s32.totalorder %s25, 0
      %p108 = por %p106, %p107
      %p109 = scmp.ne.s32.totalorder %s101, %s103
      %p110 = scmp.eq.s32.totalorder %s30, 1
      %p111 = por %p109, %p110
      %p112 = scmp.ne.s32.totalorder %s103, %s104
      %p113 = scmp.eq.s32.totalorder %s30, 0
      %p114 = por %p112, %p113
      %p115 = scmp.ne.s32.totalorder %s103, %s104
      %p116 = scmp.eq.s32.totalorder %s31, 1
      %p117 = por %p115, %p116
      %p119 = scmp.ne.s32.totalorder %s104, %s118
      %p120 = scmp.eq.s32.totalorder %s31, 0
      %p121 = por %p119, %p120
      %s123 = sadd.s32 %s122, 1
      %p126 = scmp.eq.s32.totalorder %s25, 1
      %p127 = scmp.ne.s32.totalorder %s122, %s124
      %p128 = scmp.eq.s32.totalorder %s25, 0
      %p129 = por %p127, %p128
      %p130 = scmp.ne.s32.totalorder %s122, %s124
      %p131 = scmp.eq.s32.totalorder %s30, 1
      %p132 = por %p130, %p131
      %p133 = scmp.ne.s32.totalorder %s124, %s125
      %p134 = scmp.eq.s32.totalorder %s30, 0
      %p135 = por %p133, %p134
      %p136 = scmp.ne.s32.totalorder %s124, %s125
      %p137 = scmp.eq.s32.totalorder %s31, 1
      %p138 = por %p136, %p137
      %p140 = scmp.ne.s32.totalorder %s125, %s139
      %p141 = scmp.eq.s32.totalorder %s31, 0
      %p142 = por %p140, %p141
      %s144 = sadd.s32 %s143, 1
      %p147 = scmp.eq.s32.totalorder %s25, 1
      %p148 = scmp.ne.s32.totalorder %s143, %s145
      %p149 = scmp.eq.s32.totalorder %s25, 0
      %p150 = por %p148, %p149
      %p151 = scmp.ne.s32.totalorder %s143, %s145
      %p152 = scmp.eq.s32.totalorder %s30, 1
      %p153 = por %p151, %p152
      %p154 = scmp.ne.s32.totalorder %s145, %s146
      %p155 = scmp.eq.s32.totalorder %s30, 0
      %p156 = por %p154, %p155
      %p157 = scmp.ne.s32.totalorder %s145, %s146
      %p158 = scmp.eq.s32.totalorder %s31, 1
      %p159 = por %p157, %p158
      %p161 = scmp.ne.s32.totalorder %s146, %s160
      %p162 = scmp.eq.s32.totalorder %s31, 0
      %p163 = por %p161, %p162
      %s165 = sadd.s32 %s164, 1
      %p168 = scmp.eq.s32.totalorder %s25, 1
      %p169 = scmp.ne.s32.totalorder %s164, %s166
      %p170 = scmp.eq.s32.totalorder %s25, 0
      %p171 = por %p169, %p170
      %p172 = scmp.ne.s32.totalorder %s164, %s166
      %p173 = scmp.eq.s32.totalorder %s30, 1
      %p174 = por %p172, %p173
      %p175 = scmp.ne.s32.totalorder %s166, %s167
      %p176 = scmp.eq.s32.totalorder %s30, 0
      %p177 = por %p175, %p176
      %p178 = scmp.ne.s32.totalorder %s166, %s167
      %p179 = scmp.eq.s32.totalorder %s31, 1
      %p180 = por %p178, %p179
      %p182 = scmp.ne.s32.totalorder %s167, %s181
      %p183 = scmp.eq.s32.totalorder %s31, 0
      %p184 = por %p182, %p183
      %s186 = sadd.s32 %s185, 1
      %p189 = scmp.eq.s32.totalorder %s25, 1
      %p190 = scmp.ne.s32.totalorder %s185, %s187
      %p191 = scmp.eq.s32.totalorder %s25, 0
      %p192 = por %p190, %p191
      %p193 = scmp.ne.s32.totalorder %s185, %s187
      %p194 = scmp.eq.s32.totalorder %s30, 1
      %p195 = por %p193, %p194
      %p196 = scmp.ne.s32.totalorder %s187, %s188
      %p197 = scmp.eq.s32.totalorder %s30, 0
      %p198 = por %p196, %p197
      %p199 = scmp.ne.s32.totalorder %s187, %s188
      %p200 = scmp.eq.s32.totalorder %s31, 1
      %p201 = por %p199, %p200
      %p203 = scmp.ne.s32.totalorder %s188, %s202
      %p204 = scmp.eq.s32.totalorder %s31, 0
      %p205 = por %p203, %p204
      %s207 = sadd.s32 %s206, 1
      %p210 = scmp.eq.s32.totalorder %s25, 1
      %p211 = scmp.ne.s32.totalorder %s206, %s208
      %p212 = scmp.eq.s32.totalorder %s25, 0
      %p213 = por %p211, %p212
      %p214 = scmp.ne.s32.totalorder %s206, %s208
      %p215 = scmp.eq.s32.totalorder %s30, 1
      %p216 = por %p214, %p215
      %p217 = scmp.ne.s32.totalorder %s208, %s209
      %p218 = scmp.eq.s32.totalorder %s30, 0
      %p219 = por %p217, %p218
      %p220 = scmp.ne.s32.totalorder %s208, %s209
      %p221 = scmp.eq.s32.totalorder %s31, 1
      %p222 = por %p220, %p221
      %p224 = scmp.ne.s32.totalorder %s209, %s223
      %p225 = scmp.eq.s32.totalorder %s31, 0
      %p226 = por %p224, %p225
      %s228 = sadd.s32 %s227, 1
      %p231 = scmp.eq.s32.totalorder %s25, 1
      %p232 = scmp.ne.s32.totalorder %s227, %s229
      %p233 = scmp.eq.s32.totalorder %s25, 0
      %p234 = por %p232, %p233
      %p235 = scmp.ne.s32.totalorder %s227, %s229
      %p236 = scmp.eq.s32.totalorder %s30, 1
      %p237 = por %p235, %p236
      %p238 = scmp.ne.s32.totalorder %s229, %s230
      %p239 = scmp.eq.s32.totalorder %s30, 0
      %p240 = por %p238, %p239
      %p241 = scmp.ne.s32.totalorder %s229, %s230
      %p242 = scmp.eq.s32.totalorder %s31, 1
      %p243 = por %p241, %p242
      %p245 = scmp.ne.s32.totalorder %s230, %s244
      %p246 = scmp.eq.s32.totalorder %s31, 0
      %p247 = por %p245, %p246
      %s249 = sadd.s32 %s248, 1
      %p252 = scmp.eq.s32.totalorder %s25, 1
      %p253 = scmp.ne.s32.totalorder %s248, %s250
      %p254 = scmp.eq.s32.totalorder %s25, 0
      %p255 = por %p253, %p254
      %p256 = scmp.ne.s32.totalorder %s248, %s250
      %p257 = scmp.eq.s32.totalorder %s30, 1
      %p258 = por %p256, %p257
      %p259 = scmp.ne.s32.totalorder %s250, %s251
      %p260 = scmp.eq.s32.totalorder %s30, 0
      %p261 = por %p259, %p260
      %p262 = scmp.ne.s32.totalorder %s250, %s251
      %p263 = scmp.eq.s32.totalorder %s31, 1
      %p264 = por %p262, %p263
      %p266 = scmp.ne.s32.totalorder %s251, %s265
      %p267 = scmp.eq.s32.totalorder %s31, 0
      %p268 = por %p266, %p267
      %s270 = sadd.s32 %s269, 1
      %p273 = scmp.eq.s32.totalorder %s25, 1
      %p274 = scmp.ne.s32.totalorder %s269, %s271
      %p275 = scmp.eq.s32.totalorder %s25, 0
      %p276 = por %p274, %p275
      %p277 = scmp.ne.s32.totalorder %s269, %s271
      %p278 = scmp.eq.s32.totalorder %s30, 1
      %p279 = por %p277, %p278
      %p280 = scmp.ne.s32.totalorder %s271, %s272
      %p281 = scmp.eq.s32.totalorder %s30, 0
      %p282 = por %p280, %p281
      %p283 = scmp.ne.s32.totalorder %s271, %s272
      %p284 = scmp.eq.s32.totalorder %s31, 1
      %p285 = por %p283, %p284
      %p287 = scmp.ne.s32.totalorder %s272, %s286
      %p288 = scmp.eq.s32.totalorder %s31, 0
      %p289 = por %p287, %p288
      %s291 = sadd.s32 %s290, 1
      %p294 = scmp.eq.s32.totalorder %s25, 1
      %p295 = scmp.ne.s32.totalorder %s290, %s292
      %p296 = scmp.eq.s32.totalorder %s25, 0
      %p297 = por %p295, %p296
      %p298 = scmp.ne.s32.totalorder %s290, %s292
      %p299 = scmp.eq.s32.totalorder %s30, 1
      %p300 = por %p298, %p299
      %p301 = scmp.ne.s32.totalorder %s292, %s293
      %p302 = scmp.eq.s32.totalorder %s30, 0
      %p303 = por %p301, %p302
      %p304 = scmp.ne.s32.totalorder %s292, %s293
      %p305 = scmp.eq.s32.totalorder %s31, 1
      %p306 = por %p304, %p305
      %p308 = scmp.ne.s32.totalorder %s293, %s307
      %p309 = scmp.eq.s32.totalorder %s31, 0
      %p310 = por %p308, %p309
      %s311 = ssub.s32 %s25, %s32
      %p312 = scmp.eq.s32.totalorder %s311, 0
      %s314 = sadd.s32 %s313, 1
      %s315 = scalar_select %p312, %s313, %s314
      %p318 = pneg %p312
      %p319 = scmp.eq.s32.totalorder %s25, 1
      %p320 = por %p318, %p319
      %p321 = scmp.ne.s32.totalorder %s313, %s316
      %p322 = scmp.eq.s32.totalorder %s25, 0
      %p323 = por %p321, %p322
      %p324 = scmp.ne.s32.totalorder %s313, %s316
      %p325 = scmp.eq.s32.totalorder %s30, 1
      %p326 = por %p324, %p325
      %p327 = scmp.ne.s32.totalorder %s316, %s317
      %p328 = scmp.eq.s32.totalorder %s30, 0
      %p329 = por %p327, %p328
      %p330 = scmp.ne.s32.totalorder %s316, %s317
      %p331 = scmp.eq.s32.totalorder %s31, 1
      %p332 = por %p330, %p331
      %p334 = scmp.ne.s32.totalorder %s317, %s333
      %p335 = scmp.eq.s32.totalorder %s31, 0
      %p336 = por %p334, %p335
      %p337 = scmp.le.s32.totalorder 1, %s25
      %p338 = scmp.lt.s32.totalorder %s25, 3
      %p339 = pnand %p337, %p338
      %p340 = pneg %p339
      // Predicated region
      $region9: #{tpu_custom_call.1} parent=5 // pred_check
        _
      $region10: #{tpu_custom_call.1} parent=5 // pred_check_branch
        %342 = sbr.rel (%p339) target = $region12
      $region11: #{tpu_custom_call.1} parent=5 // pred_region
        %s343 = ssub.s32 %s25, 1
        // Predicated region
        $region13: #{tpu_custom_call.1} parent=11 // pred_check
          %p344 = pneg %p72
        $region14: #{tpu_custom_call.1} parent=11 // pred_check_branch
          %346 = sbr.rel (%p344) target = $region16
        $region15: #{tpu_custom_call.1} parent=11 // pred_region
          _
        $region16: #{tpu_custom_call.1} parent=11 // pred_fallthru
          _
        // Predicated region
        $region17: #{tpu_custom_call.1} parent=11 // pred_check
          %p347 = pneg %p93
        $region18: #{tpu_custom_call.1} parent=11 // pred_check_branch
          %349 = sbr.rel (%p347) target = $region20
        $region19: #{tpu_custom_call.1} parent=11 // pred_region
          _
        $region20: #{tpu_custom_call.1} parent=11 // pred_fallthru
          _
        // Predicated region
        $region21: #{tpu_custom_call.1} parent=11 // pred_check
          %p350 = pneg %p114
        $region22: #{tpu_custom_call.1} parent=11 // pred_check_branch
          %352 = sbr.rel (%p350) target = $region24
        $region23: #{tpu_custom_call.1} parent=11 // pred_region
          _
        $region24: #{tpu_custom_call.1} parent=11 // pred_fallthru
          _
        // Predicated region
        $region25: #{tpu_custom_call.1} parent=11 // pred_check
          %p353 = pneg %p135
        $region26: #{tpu_custom_call.1} parent=11 // pred_check_branch
          %355 = sbr.rel (%p353) target = $region28
        $region27: #{tpu_custom_call.1} parent=11 // pred_region
          _
        $region28: #{tpu_custom_call.1} parent=11 // pred_fallthru
          _
        // Predicated region
        $region29: #{tpu_custom_call.1} parent=11 // pred_check
          %p356 = pneg %p156
        $region30: #{tpu_custom_call.1} parent=11 // pred_check_branch
          %358 = sbr.rel (%p356) target = $region32
        $region31: #{tpu_custom_call.1} parent=11 // pred_region
          %s360 = ssub.s32 16, 16
          %361 = vsyncadd [#allocation3], %s360
          %s363 = sshll.u32 [#allocation2], 4
          %s364 = int_to_ptr.vmem [resolvable:$true] %s363
          %366 = dma.hbm_to_vmem [thread:$0]  %s5, 16, %s364, [#allocation3]
        $region32: #{tpu_custom_call.1} parent=11 // pred_fallthru
          _
        // Predicated region
        $region33: #{tpu_custom_call.1} parent=11 // pred_check
          %p367 = pneg %p177
        $region34: #{tpu_custom_call.1} parent=11 // pred_check_branch
          %369 = sbr.rel (%p367) target = $region36
        $region35: #{tpu_custom_call.1} parent=11 // pred_region
          %s371 = ssub.s32 16, 16
          %372 = vsyncadd [#allocation6], %s371
          %s374 = sshll.u32 [#allocation5], 4
          %s375 = int_to_ptr.vmem [resolvable:$true] %s374
          %377 = dma.hbm_to_vmem [thread:$0]  %s6, 16, %s375, [#allocation6]
        $region36: #{tpu_custom_call.1} parent=11 // pred_fallthru
          _
        // Predicated region
        $region37: #{tpu_custom_call.1} parent=11 // pred_check
          %p378 = pneg %p198
        $region38: #{tpu_custom_call.1} parent=11 // pred_check_branch
          %380 = sbr.rel (%p378) target = $region40
        $region39: #{tpu_custom_call.1} parent=11 // pred_region
          %s382 = ssub.s32 16, 16
          %383 = vsyncadd [#allocation6], %s382
          %s385 = sshll.u32 [#allocation7], 4
          %s386 = int_to_ptr.vmem [resolvable:$true] %s385
          %388 = dma.hbm_to_vmem [thread:$0]  %s7, 16, %s386, [#allocation6]
        $region40: #{tpu_custom_call.1} parent=11 // pred_fallthru
          _
        // Predicated region
        $region41: #{tpu_custom_call.1} parent=11 // pred_check
          %p389 = pneg %p219
        $region42: #{tpu_custom_call.1} parent=11 // pred_check_branch
          %391 = sbr.rel (%p389) target = $region44
        $region43: #{tpu_custom_call.1} parent=11 // pred_region
          %s393 = ssub.s32 16, 16
          %394 = vsyncadd [#allocation9], %s393
          %s396 = sshll.u32 [#allocation8], 4
          %s397 = int_to_ptr.vmem [resolvable:$true] %s396
          %399 = dma.hbm_to_vmem [thread:$0]  %s8, 16, %s397, [#allocation9]
        $region44: #{tpu_custom_call.1} parent=11 // pred_fallthru
          _
        // Predicated region
        $region45: #{tpu_custom_call.1} parent=11 // pred_check
          %p400 = pneg %p240
        $region46: #{tpu_custom_call.1} parent=11 // pred_check_branch
          %402 = sbr.rel (%p400) target = $region48
        $region47: #{tpu_custom_call.1} parent=11 // pred_region
          _
        $region48: #{tpu_custom_call.1} parent=11 // pred_fallthru
          _
        // Predicated region
        $region49: #{tpu_custom_call.1} parent=11 // pred_check
          %p403 = pneg %p261
        $region50: #{tpu_custom_call.1} parent=11 // pred_check_branch
          %405 = sbr.rel (%p403) target = $region52
        $region51: #{tpu_custom_call.1} parent=11 // pred_region
          _
        $region52: #{tpu_custom_call.1} parent=11 // pred_fallthru
          _
        // Predicated region
        $region53: #{tpu_custom_call.1} parent=11 // pred_check
          %p406 = pneg %p282
        $region54: #{tpu_custom_call.1} parent=11 // pred_check_branch
          %408 = sbr.rel (%p406) target = $region56
        $region55: #{tpu_custom_call.1} parent=11 // pred_region
          _
        $region56: #{tpu_custom_call.1} parent=11 // pred_fallthru
          _
        // Predicated region
        $region57: #{tpu_custom_call.1} parent=11 // pred_check
          %p409 = pneg %p303
        $region58: #{tpu_custom_call.1} parent=11 // pred_check_branch
          %411 = sbr.rel (%p409) target = $region60
        $region59: #{tpu_custom_call.1} parent=11 // pred_region
          _
        $region60: #{tpu_custom_call.1} parent=11 // pred_fallthru
          _
      $region12: #{tpu_custom_call.1} parent=5 // pred_fallthru
        _
      %p412 = scmp.lt.s32.totalorder %s25, 2
      // Predicated region
      $region61: #{tpu_custom_call.1} parent=5 // pred_check
        %p413 = pneg %p412
      $region62: #{tpu_custom_call.1} parent=5 // pred_check_branch
        %415 = sbr.rel (%p413) target = $region64
      $region63: #{tpu_custom_call.1} parent=5 // pred_region
        // Predicated region
        $region65: #{tpu_custom_call.1} parent=63 // pred_check
          %p416 = pneg %p45
        $region66: #{tpu_custom_call.1} parent=63 // pred_check_branch
          %418 = sbr.rel (%p416) target = $region68
        $region67: #{tpu_custom_call.1} parent=63 // pred_region
          %p419 = scmp.lt.s32.totalorder %s25, 1
          %s420 = scalar_select %p419, %s25, 1
          %s421 = smul.addr %s420, 8
          %s422 = scalar_lea.vmem %s0, %s421
        $region68: #{tpu_custom_call.1} parent=63 // pred_fallthru
          _
      $region64: #{tpu_custom_call.1} parent=5 // pred_fallthru
        _
      %p423 = scmp.le.s32.totalorder 1, %s25
      %p424 = scmp.lt.s32.totalorder %s25, 3
      %p425 = pnand %p423, %p424
      %p426 = pneg %p425
      // Predicated region
      $region69: #{tpu_custom_call.1} parent=5 // pred_check
        _
      $region70: #{tpu_custom_call.1} parent=5 // pred_check_branch
        %428 = sbr.rel (%p425) target = $region72
      $region71: #{tpu_custom_call.1} parent=5 // pred_region
        %s429 = ssub.s32 %s25, 1
        // Predicated region
        $region73: #{tpu_custom_call.1} parent=71 // pred_check
          %p430 = pneg %p156
        $region74: #{tpu_custom_call.1} parent=71 // pred_check_branch
          %432 = sbr.rel (%p430) target = $region76
        $region75: #{tpu_custom_call.1} parent=71 // pred_region
          %433 = dma.done [#allocation3], 16
        $region76: #{tpu_custom_call.1} parent=71 // pred_fallthru
          _
        // Predicated region
        $region77: #{tpu_custom_call.1} parent=71 // pred_check
          %p434 = pneg %p177
        $region78: #{tpu_custom_call.1} parent=71 // pred_check_branch
          %436 = sbr.rel (%p434) target = $region80
        $region79: #{tpu_custom_call.1} parent=71 // pred_region
          %437 = dma.done [#allocation6], 16
        $region80: #{tpu_custom_call.1} parent=71 // pred_fallthru
          _
        // Predicated region
        $region81: #{tpu_custom_call.1} parent=71 // pred_check
          %p438 = pneg %p198
        $region82: #{tpu_custom_call.1} parent=71 // pred_check_branch
          %440 = sbr.rel (%p438) target = $region84
        $region83: #{tpu_custom_call.1} parent=71 // pred_region
          %441 = dma.done [#allocation6], 16
        $region84: #{tpu_custom_call.1} parent=71 // pred_fallthru
          _
        // Predicated region
        $region85: #{tpu_custom_call.1} parent=71 // pred_check
          %p442 = pneg %p219
        $region86: #{tpu_custom_call.1} parent=71 // pred_check_branch
          %444 = sbr.rel (%p442) target = $region88
        $region87: #{tpu_custom_call.1} parent=71 // pred_region
          %445 = dma.done [#allocation9], 16
        $region88: #{tpu_custom_call.1} parent=71 // pred_fallthru
          _
        %p446 = scmp.lt.s32.totalorder %s30, 1
        %s447 = scalar_select %p446, %s30, 1
        %s448 = smul.addr %s447, 8
        %s449 = scalar_lea.vmem %s0, %s448
        %p450 = pneg %p51
        %p451 = pneg %p48
        %p452 = pneg %p72
        %p453 = pneg %p69
        %p454 = pneg %p93
        %p455 = pneg %p90
        %p456 = pneg %p114
        %p457 = pneg %p111
        %p458 = pneg %p135
        %p459 = pneg %p132
        %p460 = pneg %p156
        %p461 = pneg %p153
        %p462 = pneg %p177
        %p463 = pneg %p174
        %p464 = pneg %p198
        %p465 = pneg %p195
        %p466 = pneg %p219
        %p467 = pneg %p216
        %p468 = pneg %p240
        %p469 = pneg %p237
        %p470 = pneg %p261
        %p471 = pneg %p258
        %p472 = pneg %p282
        %p473 = pneg %p279
        %p474 = pneg %p303
        %p475 = pneg %p300
        %p476 = pneg %p329
        %p477 = pneg %p326
        %s478 = sand.u32 %s316, 1
        %s479 = scalar_lea.sflag [#allocation4], %s478
        %s480 = sand.u32 %s316, 1
        %s481 = smul.addr %s480, 8
        %s482 = scalar_lea.vmem [#allocation10], %s481
        %p483 = scmp.lt.s32.totalorder %s30, 1
        %s484 = scalar_select %p483, %s30, 1
        %s485 = smul.addr %s484, 8
        %s486 = scalar_lea.vmem %s0, %s485
        %v488 = vld [vmem:[%s486] sm:$0xff]
        %v489 = vpack.c.bf16 %v488, %v488
        %v490 = vld [vmem:[%s1] sm:$0xf]
        %v491 = vld [vmem:[%s1 + $0x4] sm:$0xf]
        %v492 = vld [vmem:[%s1 + $0x8] sm:$0xf]
        %v493 = vld [vmem:[%s1 + $0xc] sm:$0xf]
        %v494 = vld [vmem:[%s2] sm:$0x1]
        %v496 = vlaneseq
        %v497 = vshrl.u32 %v496, 7
        %v498 = vsub.s32 0, %v497
        %v499 = vrot.slane %v494, %v498
        %v505 = vunpack.c.l.b16 %v490
        %v506 = vunpack.c.l.b16 %v491
        %v507 = vunpack.c.l.b16 %v492
        %v508 = vunpack.c.l.b16 %v493
        %v509 = vpack.c.b16 %v506, %v505
        %v510 = vpack.c.b16 %v508, %v507
        %vm513 = vcmask 261120
        %v515 = vsel %vm513, %v489, 0
        %517 = vmatprep.subr.bf16.mxu0 0
        %518 = vmatpush1.bf16.msra.mxu0 %v509
        %519 = vmatprep.subr.bf16.mxu0 0
        %520 = vmatpush1.bf16.msra.mxu0 %v510
        %521 = vmatprep.subr.bf16.mxu0 0
        %522 = vmatpush1.bf16.msra.mxu0 0
        %523 = vmatprep.subr.bf16.mxu0 0
        %524 = vmatpush1.bf16.msra.mxu0 0
        %525 = vmatprep.subr.bf16.mxu0 0
        %526 = vmatpush1.bf16.msra.mxu0 0
        %527 = vmatprep.subr.bf16.mxu0 0
        %528 = vmatpush1.bf16.msra.mxu0 0
        %529 = vmatprep.subr.bf16.mxu0 0
        %530 = vmatpush1.bf16.msra.mxu0 0
        %531 = vmatprep.subr.bf16.mxu0 0
        %532 = vmatpush1.bf16.msra.mxu0 0
        %533 = vmatprep.subr.bf16.mxu0 0
        %534 = vmatpush1.bf16.msra.mxu0 0
        %535 = vmatprep.subr.bf16.mxu0 0
        %536 = vmatpush1.bf16.msra.mxu0 0
        %537 = vmatprep.subr.bf16.mxu0 0
        %538 = vmatpush1.bf16.msra.mxu0 0
        %539 = vmatprep.subr.bf16.mxu0 0
        %540 = vmatpush1.bf16.msra.mxu0 0
        %541 = vmatprep.subr.bf16.mxu0 0
        %542 = vmatpush1.bf16.msra.mxu0 0
        %543 = vmatprep.subr.bf16.mxu0 0
        %544 = vmatpush1.bf16.msra.mxu0 0
        %545 = vmatprep.subr.bf16.mxu0 0
        %546 = vmatpush1.bf16.msra.mxu0 0
        %547 = vmatprep.subr.bf16.mxu0 0
        %548 = vmatpush1.bf16.msra.mxu0 0
        %549 = vmatprep.mubr.bf16.mxu0 0
        %550 = vmatmul.mubr.bf16.gmra.mrb[0].mxu0 %v515
        %v551 = vpop.f32.mrb[0].mxu0
        %v552 = vadd.f32 %v499, %v551
        %v553 = vpop.f32.mrb[0].mxu0
        %v554 = vpop.f32.mrb[0].mxu0
        %v555 = vpop.f32.mrb[0].mxu0
        %556 = vdwg.mxu0
        %v557 = vmul.f32 %v552, 0.35355338
        %v558 = vpack.c.bf16 %v557, %v557
        %v559 = vpack.c.bf16 %v552, %v552
        %561 = vrot.lane.b32.xlu0 %v559, 96
        %v562 = vpop.permute.xlu0 %561
        %vm563 = vcmask 64512
        %v565 = vsel %vm563, %v558, 0
        %v568 = vsel %vm563, %v562, 0
        %570 = vmatprep.subr.bf16.mxu0 0
        %571 = vmatpush1.bf16.xpose.msra.mxu0 %v568
        %572 = vmatprep.subr.bf16.mxu0 0
        %573 = vmatpush1.bf16.xpose.msra.mxu0 0
        %574 = vmatprep.subr.bf16.mxu0 0
        %575 = vmatpush1.bf16.xpose.msra.mxu0 0
        %576 = vmatprep.subr.bf16.mxu0 0
        %577 = vmatpush1.bf16.xpose.msra.mxu0 0
        %578 = vmatprep.subr.bf16.mxu0 0
        %579 = vmatpush1.bf16.xpose.msra.mxu0 0
        %580 = vmatprep.subr.bf16.mxu0 0
        %581 = vmatpush1.bf16.xpose.msra.mxu0 0
        %582 = vmatprep.subr.bf16.mxu0 0
        %583 = vmatpush1.bf16.xpose.msra.mxu0 0
        %584 = vmatprep.subr.bf16.mxu0 0
        %585 = vmatpush1.bf16.xpose.msra.mxu0 0
        %586 = vmatprep.subr.bf16.mxu0 0
        %587 = vmatpush1.bf16.xpose.msra.mxu0 0
        %588 = vmatprep.subr.bf16.mxu0 0
        %589 = vmatpush1.bf16.xpose.msra.mxu0 0
        %590 = vmatprep.subr.bf16.mxu0 0
        %591 = vmatpush1.bf16.xpose.msra.mxu0 0
        %592 = vmatprep.subr.bf16.mxu0 0
        %593 = vmatpush1.bf16.xpose.msra.mxu0 0
        %594 = vmatprep.subr.bf16.mxu0 0
        %595 = vmatpush1.bf16.xpose.msra.mxu0 0
        %596 = vmatprep.subr.bf16.mxu0 0
        %597 = vmatpush1.bf16.xpose.msra.mxu0 0
        %598 = vmatprep.subr.bf16.mxu0 0
        %599 = vmatpush1.bf16.xpose.msra.mxu0 0
        %600 = vmatprep.subr.bf16.mxu0 0
        %601 = vmatpush1.bf16.xpose.msra.mxu0 0
        %602 = vmatprep.mubr.bf16.mxu0 0
        %603 = vmatmul.mubr.bf16.gmra.mrb[0].mxu0 %v565
        %v604 = vpop.f32.mrb[0].mxu0
        %v605 = vadd.f32 0.0, %v604
        %v606 = vpop.f32.mrb[0].mxu0
        %v607 = vpop.f32.mrb[0].mxu0
        %v608 = vpop.f32.mrb[0].mxu0
        %609 = vdwg.mxu0
        %v610 = vsel %vm563, %v605, -inf
        %611 = vmax.xlane.f32.xlu0 %v610
        %v612 = vpop.xlane.xlu0 %611
        %v613 = vsub.f32 %v605, %v612
        %v614 = vmul.f32 %v613, 1.442695
        %v615 = vpow.pop %v614
        %v616 = vsel %vm563, %v615, 0.0
        %617 = vadd.xlane.f32.xlu0 %v616
        %v618 = vpop.xlane.xlu0 %617
        %v619 = vrcp.pop %v618
        %v620 = vmul.f32 %v615, %v619
        %v621 = vpack.c.bf16 %v620, %v620
        %622 = vrot.lane.b32.xlu0 %v559, 64
        %v623 = vpop.permute.xlu0 %622
        %v625 = vsel %vm563, %v621, 0
        %vm627 = vcmask 1043456
        %v629 = vsel %vm627, %v623, 0
        %631 = vmatprep.subr.bf16.mxu0 0
        %632 = vmatpush1.bf16.msra.mxu0 %v629
        %633 = vmatprep.subr.bf16.mxu0 0
        %634 = vmatpush1.bf16.msra.mxu0 0
        %635 = vmatprep.subr.bf16.mxu0 0
        %636 = vmatpush1.bf16.msra.mxu0 0
        %637 = vmatprep.subr.bf16.mxu0 0
        %638 = vmatpush1.bf16.msra.mxu0 0
        %639 = vmatprep.subr.bf16.mxu0 0
        %640 = vmatpush1.bf16.msra.mxu0 0
        %641 = vmatprep.subr.bf16.mxu0 0
        %642 = vmatpush1.bf16.msra.mxu0 0
        %643 = vmatprep.subr.bf16.mxu0 0
        %644 = vmatpush1.bf16.msra.mxu0 0
        %645 = vmatprep.subr.bf16.mxu0 0
        %646 = vmatpush1.bf16.msra.mxu0 0
        %647 = vmatprep.subr.bf16.mxu0 0
        %648 = vmatpush1.bf16.msra.mxu0 0
        %649 = vmatprep.subr.bf16.mxu0 0
        %650 = vmatpush1.bf16.msra.mxu0 0
        %651 = vmatprep.subr.bf16.mxu0 0
        %652 = vmatpush1.bf16.msra.mxu0 0
        %653 = vmatprep.subr.bf16.mxu0 0
        %654 = vmatpush1.bf16.msra.mxu0 0
        %655 = vmatprep.subr.bf16.mxu0 0
        %656 = vmatpush1.bf16.msra.mxu0 0
        %657 = vmatprep.subr.bf16.mxu0 0
        %658 = vmatpush1.bf16.msra.mxu0 0
        %659 = vmatprep.subr.bf16.mxu0 0
        %660 = vmatpush1.bf16.msra.mxu0 0
        %661 = vmatprep.subr.bf16.mxu0 0
        %662 = vmatpush1.bf16.msra.mxu0 0
        %663 = vmatprep.mubr.bf16.mxu0 0
        %664 = vmatmul.mubr.bf16.gmra.mrb[0].mxu0 %v625
        %v665 = vpop.f32.mrb[0].mxu0
        %v666 = vadd.f32 0.0, %v665
        %v667 = vpop.f32.mrb[0].mxu0
        %v668 = vpop.f32.mrb[0].mxu0
        %v669 = vpop.f32.mrb[0].mxu0
        %670 = vdwg.mxu0
        %672 = vrot.lane.b32.xlu0 %v558, 120
        %v673 = vpop.permute.xlu0 %672
        %674 = vrot.lane.b32.xlu0 %v559, 88
        %v675 = vpop.permute.xlu0 %674
        %v677 = vsel %vm563, %v673, 0
        %v680 = vsel %vm563, %v675, 0
        %682 = vmatprep.subr.bf16.mxu0 0
        %683 = vmatpush1.bf16.xpose.msra.mxu0 %v680
        %684 = vmatprep.subr.bf16.mxu0 0
        %685 = vmatpush1.bf16.xpose.msra.mxu0 0
        %686 = vmatprep.subr.bf16.mxu0 0
        %687 = vmatpush1.bf16.xpose.msra.mxu0 0
        %688 = vmatprep.subr.bf16.mxu0 0
        %689 = vmatpush1.bf16.xpose.msra.mxu0 0
        %690 = vmatprep.subr.bf16.mxu0 0
        %691 = vmatpush1.bf16.xpose.msra.mxu0 0
        %692 = vmatprep.subr.bf16.mxu0 0
        %693 = vmatpush1.bf16.xpose.msra.mxu0 0
        %694 = vmatprep.subr.bf16.mxu0 0
        %695 = vmatpush1.bf16.xpose.msra.mxu0 0
        %696 = vmatprep.subr.bf16.mxu0 0
        %697 = vmatpush1.bf16.xpose.msra.mxu0 0
        %698 = vmatprep.subr.bf16.mxu0 0
        %699 = vmatpush1.bf16.xpose.msra.mxu0 0
        %700 = vmatprep.subr.bf16.mxu0 0
        %701 = vmatpush1.bf16.xpose.msra.mxu0 0
        %702 = vmatprep.subr.bf16.mxu0 0
        %703 = vmatpush1.bf16.xpose.msra.mxu0 0
        %704 = vmatprep.subr.bf16.mxu0 0
        %705 = vmatpush1.bf16.xpose.msra.mxu0 0
        %706 = vmatprep.subr.bf16.mxu0 0
        %707 = vmatpush1.bf16.xpose.msra.mxu0 0
        %708 = vmatprep.subr.bf16.mxu0 0
        %709 = vmatpush1.bf16.xpose.msra.mxu0 0
        %710 = vmatprep.subr.bf16.mxu0 0
        %711 = vmatpush1.bf16.xpose.msra.mxu0 0
        %712 = vmatprep.subr.bf16.mxu0 0
        %713 = vmatpush1.bf16.xpose.msra.mxu0 0
        %714 = vmatprep.mubr.bf16.mxu0 0
        %715 = vmatmul.mubr.bf16.gmra.mrb[0].mxu0 %v677
        %v716 = vpop.f32.mrb[0].mxu0
        %v717 = vadd.f32 0.0, %v716
        %v718 = vpop.f32.mrb[0].mxu0
        %v719 = vpop.f32.mrb[0].mxu0
        %v720 = vpop.f32.mrb[0].mxu0
        %721 = vdwg.mxu0
        %v722 = vsel %vm563, %v717, -inf
        %723 = vmax.xlane.f32.xlu0 %v722
        %v724 = vpop.xlane.xlu0 %723
        %v725 = vsub.f32 %v717, %v724
        %v726 = vmul.f32 %v725, 1.442695
        %v727 = vpow.pop %v726
        %v728 = vsel %vm563, %v727, 0.0
        %729 = vadd.xlane.f32.xlu0 %v728
        %v730 = vpop.xlane.xlu0 %729
        %v731 = vrcp.pop %v730
        %v732 = vmul.f32 %v727, %v731
        %v733 = vpack.c.bf16 %v732, %v732
        %734 = vrot.lane.b32.xlu0 %v559, 56
        %v735 = vpop.permute.xlu0 %734
        %v737 = vsel %vm563, %v733, 0
        %v740 = vsel %vm627, %v735, 0
        %742 = vmatprep.subr.bf16.mxu0 0
        %743 = vmatpush1.bf16.msra.mxu0 %v740
        %744 = vmatprep.subr.bf16.mxu0 0
        %745 = vmatpush1.bf16.msra.mxu0 0
        %746 = vmatprep.subr.bf16.mxu0 0
        %747 = vmatpush1.bf16.msra.mxu0 0
        %748 = vmatprep.subr.bf16.mxu0 0
        %749 = vmatpush1.bf16.msra.mxu0 0
        %750 = vmatprep.subr.bf16.mxu0 0
        %751 = vmatpush1.bf16.msra.mxu0 0
        %752 = vmatprep.subr.bf16.mxu0 0
        %753 = vmatpush1.bf16.msra.mxu0 0
        %754 = vmatprep.subr.bf16.mxu0 0
        %755 = vmatpush1.bf16.msra.mxu0 0
        %756 = vmatprep.subr.bf16.mxu0 0
        %757 = vmatpush1.bf16.msra.mxu0 0
        %758 = vmatprep.subr.bf16.mxu0 0
        %759 = vmatpush1.bf16.msra.mxu0 0
        %760 = vmatprep.subr.bf16.mxu0 0
        %761 = vmatpush1.bf16.msra.mxu0 0
        %762 = vmatprep.subr.bf16.mxu0 0
        %763 = vmatpush1.bf16.msra.mxu0 0
        %764 = vmatprep.subr.bf16.mxu0 0
        %765 = vmatpush1.bf16.msra.mxu0 0
        %766 = vmatprep.subr.bf16.mxu0 0
        %767 = vmatpush1.bf16.msra.mxu0 0
        %768 = vmatprep.subr.bf16.mxu0 0
        %769 = vmatpush1.bf16.msra.mxu0 0
        %770 = vmatprep.subr.bf16.mxu0 0
        %771 = vmatpush1.bf16.msra.mxu0 0
        %772 = vmatprep.subr.bf16.mxu0 0
        %773 = vmatpush1.bf16.msra.mxu0 0
        %774 = vmatprep.mubr.bf16.mxu0 0
        %775 = vmatmul.mubr.bf16.gmra.mrb[0].mxu0 %v737
        %v776 = vpop.f32.mrb[0].mxu0
        %v777 = vadd.f32 0.0, %v776
        %v778 = vpop.f32.mrb[0].mxu0
        %v779 = vpop.f32.mrb[0].mxu0
        %v780 = vpop.f32.mrb[0].mxu0
        %781 = vdwg.mxu0
        %782 = vrot.lane.b32.xlu0 %v558, 112
        %v783 = vpop.permute.xlu0 %782
        %784 = vrot.lane.b32.xlu0 %v559, 80
        %v785 = vpop.permute.xlu0 %784
        %v787 = vsel %vm563, %v783, 0
        %v790 = vsel %vm563, %v785, 0
        %792 = vmatprep.subr.bf16.mxu0 0
        %793 = vmatpush1.bf16.xpose.msra.mxu0 %v790
        %794 = vmatprep.subr.bf16.mxu0 0
        %795 = vmatpush1.bf16.xpose.msra.mxu0 0
        %796 = vmatprep.subr.bf16.mxu0 0
        %797 = vmatpush1.bf16.xpose.msra.mxu0 0
        %798 = vmatprep.subr.bf16.mxu0 0
        %799 = vmatpush1.bf16.xpose.msra.mxu0 0
        %800 = vmatprep.subr.bf16.mxu0 0
        %801 = vmatpush1.bf16.xpose.msra.mxu0 0
        %802 = vmatprep.subr.bf16.mxu0 0
        %803 = vmatpush1.bf16.xpose.msra.mxu0 0
        %804 = vmatprep.subr.bf16.mxu0 0
        %805 = vmatpush1.bf16.xpose.msra.mxu0 0
        %806 = vmatprep.subr.bf16.mxu0 0
        %807 = vmatpush1.bf16.xpose.msra.mxu0 0
        %808 = vmatprep.subr.bf16.mxu0 0
        %809 = vmatpush1.bf16.xpose.msra.mxu0 0
        %810 = vmatprep.subr.bf16.mxu0 0
        %811 = vmatpush1.bf16.xpose.msra.mxu0 0
        %812 = vmatprep.subr.bf16.mxu0 0
        %813 = vmatpush1.bf16.xpose.msra.mxu0 0
        %814 = vmatprep.subr.bf16.mxu0 0
        %815 = vmatpush1.bf16.xpose.msra.mxu0 0
        %816 = vmatprep.subr.bf16.mxu0 0
        %817 = vmatpush1.bf16.xpose.msra.mxu0 0
        %818 = vmatprep.subr.bf16.mxu0 0
        %819 = vmatpush1.bf16.xpose.msra.mxu0 0
        %820 = vmatprep.subr.bf16.mxu0 0
        %821 = vmatpush1.bf16.xpose.msra.mxu0 0
        %822 = vmatprep.subr.bf16.mxu0 0
        %823 = vmatpush1.bf16.xpose.msra.mxu0 0
        %824 = vmatprep.mubr.bf16.mxu0 0
        %825 = vmatmul.mubr.bf16.gmra.mrb[0].mxu0 %v787
        %v826 = vpop.f32.mrb[0].mxu0
        %v827 = vadd.f32 0.0, %v826
        %v828 = vpop.f32.mrb[0].mxu0
        %v829 = vpop.f32.mrb[0].mxu0
        %v830 = vpop.f32.mrb[0].mxu0
        %831 = vdwg.mxu0
        %v832 = vsel %vm563, %v827, -inf
        %833 = vmax.xlane.f32.xlu0 %v832
        %v834 = vpop.xlane.xlu0 %833
        %v835 = vsub.f32 %v827, %v834
        %v836 = vmul.f32 %v835, 1.442695
        %v837 = vpow.pop %v836
        %v838 = vsel %vm563, %v837, 0.0
        %839 = vadd.xlane.f32.xlu0 %v838
        %v840 = vpop.xlane.xlu0 %839
        %v841 = vrcp.pop %v840
        %v842 = vmul.f32 %v837, %v841
        %v843 = vpack.c.bf16 %v842, %v842
        %844 = vrot.lane.b32.xlu0 %v559, 48
        %v845 = vpop.permute.xlu0 %844
        %v847 = vsel %vm563, %v843, 0
        %v850 = vsel %vm627, %v845, 0
        %852 = vmatprep.subr.bf16.mxu0 0
        %853 = vmatpush1.bf16.msra.mxu0 %v850
        %854 = vmatprep.subr.bf16.mxu0 0
        %855 = vmatpush1.bf16.msra.mxu0 0
        %856 = vmatprep.subr.bf16.mxu0 0
        %857 = vmatpush1.bf16.msra.mxu0 0
        %858 = vmatprep.subr.bf16.mxu0 0
        %859 = vmatpush1.bf16.msra.mxu0 0
        %860 = vmatprep.subr.bf16.mxu0 0
        %861 = vmatpush1.bf16.msra.mxu0 0
        %862 = vmatprep.subr.bf16.mxu0 0
        %863 = vmatpush1.bf16.msra.mxu0 0
        %864 = vmatprep.subr.bf16.mxu0 0
        %865 = vmatpush1.bf16.msra.mxu0 0
        %866 = vmatprep.subr.bf16.mxu0 0
        %867 = vmatpush1.bf16.msra.mxu0 0
        %868 = vmatprep.subr.bf16.mxu0 0
        %869 = vmatpush1.bf16.msra.mxu0 0
        %870 = vmatprep.subr.bf16.mxu0 0
        %871 = vmatpush1.bf16.msra.mxu0 0
        %872 = vmatprep.subr.bf16.mxu0 0
        %873 = vmatpush1.bf16.msra.mxu0 0
        %874 = vmatprep.subr.bf16.mxu0 0
        %875 = vmatpush1.bf16.msra.mxu0 0
        %876 = vmatprep.subr.bf16.mxu0 0
        %877 = vmatpush1.bf16.msra.mxu0 0
        %878 = vmatprep.subr.bf16.mxu0 0
        %879 = vmatpush1.bf16.msra.mxu0 0
        %880 = vmatprep.subr.bf16.mxu0 0
        %881 = vmatpush1.bf16.msra.mxu0 0
        %882 = vmatprep.subr.bf16.mxu0 0
        %883 = vmatpush1.bf16.msra.mxu0 0
        %884 = vmatprep.mubr.bf16.mxu0 0
        %885 = vmatmul.mubr.bf16.gmra.mrb[0].mxu0 %v847
        %v886 = vpop.f32.mrb[0].mxu0
        %v887 = vadd.f32 0.0, %v886
        %v888 = vpop.f32.mrb[0].mxu0
        %v889 = vpop.f32.mrb[0].mxu0
        %v890 = vpop.f32.mrb[0].mxu0
        %891 = vdwg.mxu0
        %892 = vrot.lane.b32.xlu0 %v558, 104
        %v893 = vpop.permute.xlu0 %892
        %894 = vrot.lane.b32.xlu0 %v559, 72
        %v895 = vpop.permute.xlu0 %894
        %v897 = vsel %vm563, %v893, 0
        %v900 = vsel %vm563, %v895, 0
        %902 = vmatprep.subr.bf16.mxu0 0
        %903 = vmatpush1.bf16.xpose.msra.mxu0 %v900
        %904 = vmatprep.subr.bf16.mxu0 0
        %905 = vmatpush1.bf16.xpose.msra.mxu0 0
        %906 = vmatprep.subr.bf16.mxu0 0
        %907 = vmatpush1.bf16.xpose.msra.mxu0 0
        %908 = vmatprep.subr.bf16.mxu0 0
        %909 = vmatpush1.bf16.xpose.msra.mxu0 0
        %910 = vmatprep.subr.bf16.mxu0 0
        %911 = vmatpush1.bf16.xpose.msra.mxu0 0
        %912 = vmatprep.subr.bf16.mxu0 0
        %913 = vmatpush1.bf16.xpose.msra.mxu0 0
        %914 = vmatprep.subr.bf16.mxu0 0
        %915 = vmatpush1.bf16.xpose.msra.mxu0 0
        %916 = vmatprep.subr.bf16.mxu0 0
        %917 = vmatpush1.bf16.xpose.msra.mxu0 0
        %918 = vmatprep.subr.bf16.mxu0 0
        %919 = vmatpush1.bf16.xpose.msra.mxu0 0
        %920 = vmatprep.subr.bf16.mxu0 0
        %921 = vmatpush1.bf16.xpose.msra.mxu0 0
        %922 = vmatprep.subr.bf16.mxu0 0
        %923 = vmatpush1.bf16.xpose.msra.mxu0 0
        %924 = vmatprep.subr.bf16.mxu0 0
        %925 = vmatpush1.bf16.xpose.msra.mxu0 0
        %926 = vmatprep.subr.bf16.mxu0 0
        %927 = vmatpush1.bf16.xpose.msra.mxu0 0
        %928 = vmatprep.subr.bf16.mxu0 0
        %929 = vmatpush1.bf16.xpose.msra.mxu0 0
        %930 = vmatprep.subr.bf16.mxu0 0
        %931 = vmatpush1.bf16.xpose.msra.mxu0 0
        %932 = vmatprep.subr.bf16.mxu0 0
        %933 = vmatpush1.bf16.xpose.msra.mxu0 0
        %934 = vmatprep.mubr.bf16.mxu0 0
        %935 = vmatmul.mubr.bf16.gmra.mrb[0].mxu0 %v897
        %v936 = vpop.f32.mrb[0].mxu0
        %v937 = vadd.f32 0.0, %v936
        %v938 = vpop.f32.mrb[0].mxu0
        %v939 = vpop.f32.mrb[0].mxu0
        %v940 = vpop.f32.mrb[0].mxu0
        %941 = vdwg.mxu0
        %v942 = vsel %vm563, %v937, -inf
        %943 = vmax.xlane.f32.xlu0 %v942
        %v944 = vpop.xlane.xlu0 %943
        %v945 = vsub.f32 %v937, %v944
        %v946 = vmul.f32 %v945, 1.442695
        %v947 = vpow.pop %v946
        %v948 = vsel %vm563, %v947, 0.0
        %949 = vadd.xlane.f32.xlu0 %v948
        %v950 = vpop.xlane.xlu0 %949
        %v951 = vrcp.pop %v950
        %v952 = vmul.f32 %v947, %v951
        %v953 = vpack.c.bf16 %v952, %v952
        %954 = vrot.lane.b32.xlu0 %v559, 40
        %v955 = vpop.permute.xlu0 %954
        %v957 = vsel %vm563, %v953, 0
        %v960 = vsel %vm627, %v955, 0
        %962 = vmatprep.subr.bf16.mxu0 0
        %963 = vmatpush1.bf16.msra.mxu0 %v960
        %964 = vmatprep.subr.bf16.mxu0 0
        %965 = vmatpush1.bf16.msra.mxu0 0
        %966 = vmatprep.subr.bf16.mxu0 0
        %967 = vmatpush1.bf16.msra.mxu0 0
        %968 = vmatprep.subr.bf16.mxu0 0
        %969 = vmatpush1.bf16.msra.mxu0 0
        %970 = vmatprep.subr.bf16.mxu0 0
        %971 = vmatpush1.bf16.msra.mxu0 0
        %972 = vmatprep.subr.bf16.mxu0 0
        %973 = vmatpush1.bf16.msra.mxu0 0
        %974 = vmatprep.subr.bf16.mxu0 0
        %975 = vmatpush1.bf16.msra.mxu0 0
        %976 = vmatprep.subr.bf16.mxu0 0
        %977 = vmatpush1.bf16.msra.mxu0 0
        %978 = vmatprep.subr.bf16.mxu0 0
        %979 = vmatpush1.bf16.msra.mxu0 0
        %980 = vmatprep.subr.bf16.mxu0 0
        %981 = vmatpush1.bf16.msra.mxu0 0
        %982 = vmatprep.subr.bf16.mxu0 0
        %983 = vmatpush1.bf16.msra.mxu0 0
        %984 = vmatprep.subr.bf16.mxu0 0
        %985 = vmatpush1.bf16.msra.mxu0 0
        %986 = vmatprep.subr.bf16.mxu0 0
        %987 = vmatpush1.bf16.msra.mxu0 0
        %988 = vmatprep.subr.bf16.mxu0 0
        %989 = vmatpush1.bf16.msra.mxu0 0
        %990 = vmatprep.subr.bf16.mxu0 0
        %991 = vmatpush1.bf16.msra.mxu0 0
        %992 = vmatprep.subr.bf16.mxu0 0
        %993 = vmatpush1.bf16.msra.mxu0 0
        %994 = vmatprep.mubr.bf16.mxu0 0
        %995 = vmatmul.mubr.bf16.gmra.mrb[0].mxu0 %v957
        %v996 = vpop.f32.mrb[0].mxu0
        %v997 = vadd.f32 0.0, %v996
        %v998 = vpop.f32.mrb[0].mxu0
        %v999 = vpop.f32.mrb[0].mxu0
        %v1000 = vpop.f32.mrb[0].mxu0
        %1001 = vdwg.mxu0
        %1003 = vrot.lane.b32.xlu0 %v777, 8
        %v1004 = vpop.permute.xlu0 %1003
        %1007 = vrot.lane.b32.xlu0 %v887, 16
        %v1008 = vpop.permute.xlu0 %1007
        %1011 = vrot.lane.b32.xlu0 %v997, 24
        %v1012 = vpop.permute.xlu0 %1011
        %v1014 = vsel %vm563, %v666, %v1004
        %vm1015 = vcmask 130048
        %v1016 = vsel %vm1015, %v1014, %v1008
        %vm1017 = vcmask 195584
        %v1018 = vsel %vm1017, %v1016, %v1012
        %v1019 = vpack.c.bf16 %v1018, %v1018
        %v1020 = vld [vmem:[%s3] sm:$0xf]
        %v1021 = vld [vmem:[%s3 + $0x4] sm:$0xf]
        %v1022 = vld [vmem:[%s3 + $0x8] sm:$0xf]
        %v1023 = vld [vmem:[%s3 + $0xc] sm:$0xf]
        %v1024 = vld [vmem:[%s4] sm:$0x1]
        %v1026 = vlaneseq
        %v1027 = vshrl.u32 %v1026, 7
        %v1028 = vsub.s32 0, %v1027
        %v1029 = vrot.slane %v1024, %v1028
        %v1035 = vunpack.c.l.b16 %v1020
        %v1036 = vunpack.c.l.b16 %v1021
        %v1037 = vunpack.c.l.b16 %v1022
        %v1038 = vunpack.c.l.b16 %v1023
        %v1039 = vpack.c.b16 %v1036, %v1035
        %v1040 = vpack.c.b16 %v1038, %v1037
        %v1044 = vsel %vm513, %v1019, 0
        %1046 = vmatprep.subr.bf16.mxu0 0
        %1047 = vmatpush1.bf16.msra.mxu0 %v1039
        %1048 = vmatprep.subr.bf16.mxu0 0
        %1049 = vmatpush1.bf16.msra.mxu0 %v1040
        %1050 = vmatprep.subr.bf16.mxu0 0
        %1051 = vmatpush1.bf16.msra.mxu0 0
        %1052 = vmatprep.subr.bf16.mxu0 0
        %1053 = vmatpush1.bf16.msra.mxu0 0
        %1054 = vmatprep.subr.bf16.mxu0 0
        %1055 = vmatpush1.bf16.msra.mxu0 0
        %1056 = vmatprep.subr.bf16.mxu0 0
        %1057 = vmatpush1.bf16.msra.mxu0 0
        %1058 = vmatprep.subr.bf16.mxu0 0
        %1059 = vmatpush1.bf16.msra.mxu0 0
        %1060 = vmatprep.subr.bf16.mxu0 0
        %1061 = vmatpush1.bf16.msra.mxu0 0
        %1062 = vmatprep.subr.bf16.mxu0 0
        %1063 = vmatpush1.bf16.msra.mxu0 0
        %1064 = vmatprep.subr.bf16.mxu0 0
        %1065 = vmatpush1.bf16.msra.mxu0 0
        %1066 = vmatprep.subr.bf16.mxu0 0
        %1067 = vmatpush1.bf16.msra.mxu0 0
        %1068 = vmatprep.subr.bf16.mxu0 0
        %1069 = vmatpush1.bf16.msra.mxu0 0
        %1070 = vmatprep.subr.bf16.mxu0 0
        %1071 = vmatpush1.bf16.msra.mxu0 0
        %1072 = vmatprep.subr.bf16.mxu0 0
        %1073 = vmatpush1.bf16.msra.mxu0 0
        %1074 = vmatprep.subr.bf16.mxu0 0
        %1075 = vmatpush1.bf16.msra.mxu0 0
        %1076 = vmatprep.subr.bf16.mxu0 0
        %1077 = vmatpush1.bf16.msra.mxu0 0
        %1078 = vmatprep.mubr.bf16.mxu0 0
        %1079 = vmatmul.mubr.bf16.gmra.mrb[0].mxu0 %v1044
        %v1080 = vpop.f32.mrb[0].mxu0
        %v1081 = vadd.f32 %v1029, %v1080
        %v1082 = vpop.f32.mrb[0].mxu0
        %v1083 = vpop.f32.mrb[0].mxu0
        %v1084 = vpop.f32.mrb[0].mxu0
        %1085 = vdwg.mxu0
        %v1086 = vadd.f32 %v488, %v1081
        %v1087 = vld [vmem:[#allocation2] sm:$0x1]
        %v1088 = vld [vmem:[#allocation5] sm:$0x1]
        %v1089 = vsel %vm513, %v1086, 0.0
        %1090 = vadd.xlane.f32.xlu0 %v1089
        %v1091 = vpop.xlane.xlu0 %1090
        %v1092 = vrcp.pop 32.0
        %v1093 = vmul.f32 %v1091, %v1092
        %v1094 = vsub.f32 %v1086, %v1093
        %v1095 = vmul.f32 %v1094, %v1094
        %v1096 = vsel %vm513, %v1095, 0.0
        %1097 = vadd.xlane.f32.xlu0 %v1096
        %v1098 = vpop.xlane.xlu0 %1097
        %v1099 = vmul.f32 %v1098, %v1092
        %v1100 = vadd.f32 %v1099, 1e-05
        %v1101 = vrsqrt.pop %v1100
        %v1102 = vmul.f32 %v1094, %v1101
        %v1104 = vlaneseq
        %v1105 = vshrl.u32 %v1104, 7
        %v1106 = vsub.s32 0, %v1105
        %v1107 = vrot.slane %v1087, %v1106
        %v1109 = vmul.f32 %v1102, %v1107
        %v1111 = vlaneseq
        %v1112 = vshrl.u32 %v1111, 7
        %v1113 = vsub.s32 0, %v1112
        %v1114 = vrot.slane %v1088, %v1113
        %v1116 = vadd.f32 %v1109, %v1114
        %v1117 = vpack.c.bf16 %v1116, %v1116
        %v1118 = vld [vmem:[%s9] sm:$0xf]
        %v1119 = vld [vmem:[%s9 + $0x4] sm:$0xf]
        %v1120 = vld [vmem:[%s9 + $0x8] sm:$0xf]
        %v1121 = vld [vmem:[%s9 + $0xc] sm:$0xf]
        %v1122 = vld [vmem:[%s10] sm:$0x1]
        %v1124 = vlaneseq
        %v1125 = vshrl.u32 %v1124, 7
        %v1126 = vsub.s32 0, %v1125
        %v1127 = vrot.slane %v1122, %v1126
        %v1133 = vunpack.c.l.b16 %v1118
        %v1134 = vunpack.c.l.b16 %v1119
        %v1135 = vunpack.c.l.b16 %v1120
        %v1136 = vunpack.c.l.b16 %v1121
        %v1137 = vpack.c.b16 %v1134, %v1133
        %v1138 = vpack.c.b16 %v1136, %v1135
        %v1142 = vsel %vm513, %v1117, 0
        %1144 = vmatprep.subr.bf16.mxu0 0
        %1145 = vmatpush1.bf16.msra.mxu0 %v1137
        %1146 = vmatprep.subr.bf16.mxu0 0
        %1147 = vmatpush1.bf16.msra.mxu0 %v1138
        %1148 = vmatprep.subr.bf16.mxu0 0
        %1149 = vmatpush1.bf16.msra.mxu0 0
        %1150 = vmatprep.subr.bf16.mxu0 0
        %1151 = vmatpush1.bf16.msra.mxu0 0
        %1152 = vmatprep.subr.bf16.mxu0 0
        %1153 = vmatpush1.bf16.msra.mxu0 0
        %1154 = vmatprep.subr.bf16.mxu0 0
        %1155 = vmatpush1.bf16.msra.mxu0 0
        %1156 = vmatprep.subr.bf16.mxu0 0
        %1157 = vmatpush1.bf16.msra.mxu0 0
        %1158 = vmatprep.subr.bf16.mxu0 0
        %1159 = vmatpush1.bf16.msra.mxu0 0
        %1160 = vmatprep.subr.bf16.mxu0 0
        %1161 = vmatpush1.bf16.msra.mxu0 0
        %1162 = vmatprep.subr.bf16.mxu0 0
        %1163 = vmatpush1.bf16.msra.mxu0 0
        %1164 = vmatprep.subr.bf16.mxu0 0
        %1165 = vmatpush1.bf16.msra.mxu0 0
        %1166 = vmatprep.subr.bf16.mxu0 0
        %1167 = vmatpush1.bf16.msra.mxu0 0
        %1168 = vmatprep.subr.bf16.mxu0 0
        %1169 = vmatpush1.bf16.msra.mxu0 0
        %1170 = vmatprep.subr.bf16.mxu0 0
        %1171 = vmatpush1.bf16.msra.mxu0 0
        %1172 = vmatprep.subr.bf16.mxu0 0
        %1173 = vmatpush1.bf16.msra.mxu0 0
        %1174 = vmatprep.subr.bf16.mxu0 0
        %1175 = vmatpush1.bf16.msra.mxu0 0
        %1176 = vmatprep.mubr.bf16.mxu0 0
        %1177 = vmatmul.mubr.bf16.gmra.mrb[0].mxu0 %v1142
        %v1178 = vpop.f32.mrb[0].mxu0
        %v1179 = vadd.f32 %v1127, %v1178
        %v1180 = vpop.f32.mrb[0].mxu0
        %v1181 = vpop.f32.mrb[0].mxu0
        %v1182 = vpop.f32.mrb[0].mxu0
        %1183 = vdwg.mxu0
        %v1184 = vmax.f32 %v1179, 0.0
        %v1185 = vpack.c.bf16 %v1184, %v1184
        %v1186 = vld [vmem:[%s11] sm:$0xf]
        %v1187 = vld [vmem:[%s11 + $0x4] sm:$0xf]
        %v1188 = vld [vmem:[%s11 + $0x8] sm:$0xf]
        %v1189 = vld [vmem:[%s11 + $0xc] sm:$0xf]
        %v1190 = vld [vmem:[%s11 + $0x10] sm:$0xf]
        %v1191 = vld [vmem:[%s11 + $0x14] sm:$0xf]
        %v1192 = vld [vmem:[%s11 + $0x18] sm:$0xf]
        %v1193 = vld [vmem:[%s11 + $0x1c] sm:$0xf]
        %v1194 = vld [vmem:[%s12] sm:$0x1]
        %v1196 = vlaneseq
        %v1197 = vshrl.u32 %v1196, 7
        %v1198 = vsub.s32 0, %v1197
        %v1199 = vrot.slane %v1194, %v1198
        %v1209 = vunpack.c.l.b16 %v1186
        %v1210 = vunpack.c.l.b16 %v1187
        %v1211 = vunpack.c.l.b16 %v1188
        %v1212 = vunpack.c.l.b16 %v1189
        %v1213 = vunpack.c.l.b16 %v1190
        %v1214 = vunpack.c.l.b16 %v1191
        %v1215 = vunpack.c.l.b16 %v1192
        %v1216 = vunpack.c.l.b16 %v1193
        %v1217 = vpack.c.b16 %v1210, %v1209
        %v1218 = vpack.c.b16 %v1212, %v1211
        %v1219 = vpack.c.b16 %v1214, %v1213
        %v1220 = vpack.c.b16 %v1216, %v1215
        %vm1225 = vcmask 523264
        %v1227 = vsel %vm1225, %v1185, 0
        %1229 = vmatprep.subr.bf16.mxu0 0
        %1230 = vmatpush1.bf16.msra.mxu0 %v1217
        %1231 = vmatprep.subr.bf16.mxu0 0
        %1232 = vmatpush1.bf16.msra.mxu0 %v1218
        %1233 = vmatprep.subr.bf16.mxu0 0
        %1234 = vmatpush1.bf16.msra.mxu0 %v1219
        %1235 = vmatprep.subr.bf16.mxu0 0
        %1236 = vmatpush1.bf16.msra.mxu0 %v1220
        %1237 = vmatprep.subr.bf16.mxu0 0
        %1238 = vmatpush1.bf16.msra.mxu0 0
        %1239 = vmatprep.subr.bf16.mxu0 0
        %1240 = vmatpush1.bf16.msra.mxu0 0
        %1241 = vmatprep.subr.bf16.mxu0 0
        %1242 = vmatpush1.bf16.msra.mxu0 0
        %1243 = vmatprep.subr.bf16.mxu0 0
        %1244 = vmatpush1.bf16.msra.mxu0 0
        %1245 = vmatprep.subr.bf16.mxu0 0
        %1246 = vmatpush1.bf16.msra.mxu0 0
        %1247 = vmatprep.subr.bf16.mxu0 0
        %1248 = vmatpush1.bf16.msra.mxu0 0
        %1249 = vmatprep.subr.bf16.mxu0 0
        %1250 = vmatpush1.bf16.msra.mxu0 0
        %1251 = vmatprep.subr.bf16.mxu0 0
        %1252 = vmatpush1.bf16.msra.mxu0 0
        %1253 = vmatprep.subr.bf16.mxu0 0
        %1254 = vmatpush1.bf16.msra.mxu0 0
        %1255 = vmatprep.subr.bf16.mxu0 0
        %1256 = vmatpush1.bf16.msra.mxu0 0
        %1257 = vmatprep.subr.bf16.mxu0 0
        %1258 = vmatpush1.bf16.msra.mxu0 0
        %1259 = vmatprep.subr.bf16.mxu0 0
        %1260 = vmatpush1.bf16.msra.mxu0 0
        %1261 = vmatprep.mubr.bf16.mxu0 0
        %1262 = vmatmul.mubr.bf16.gmra.mrb[0].mxu0 %v1227
        %v1263 = vpop.f32.mrb[0].mxu0
        %v1264 = vadd.f32 %v1199, %v1263
        %v1265 = vpop.f32.mrb[0].mxu0
        %v1266 = vpop.f32.mrb[0].mxu0
        %v1267 = vpop.f32.mrb[0].mxu0
        %1268 = vdwg.mxu0
        %v1269 = vadd.f32 %v1116, %v1264
        %v1270 = vld [vmem:[#allocation7] sm:$0x1]
        %v1271 = vld [vmem:[#allocation8] sm:$0x1]
        %v1272 = vsel %vm513, %v1269, 0.0
        %1273 = vadd.xlane.f32.xlu0 %v1272
        %v1274 = vpop.xlane.xlu0 %1273
        %v1275 = vmul.f32 %v1274, %v1092
        %v1276 = vsub.f32 %v1269, %v1275
        %v1277 = vmul.f32 %v1276, %v1276
        %v1278 = vsel %vm513, %v1277, 0.0
        %1279 = vadd.xlane.f32.xlu0 %v1278
        %v1280 = vpop.xlane.xlu0 %1279
        %v1281 = vmul.f32 %v1280, %v1092
        %v1282 = vadd.f32 %v1281, 1e-05
        %v1283 = vrsqrt.pop %v1282
        %v1284 = vmul.f32 %v1276, %v1283
        %v1286 = vlaneseq
        %v1287 = vshrl.u32 %v1286, 7
        %v1288 = vsub.s32 0, %v1287
        %v1289 = vrot.slane %v1270, %v1288
        %v1291 = vmul.f32 %v1284, %v1289
        %v1293 = vlaneseq
        %v1294 = vshrl.u32 %v1293, 7
        %v1295 = vsub.s32 0, %v1294
        %v1296 = vrot.slane %v1271, %v1295
        %v1298 = vadd.f32 %v1291, %v1296
        %1299 = vst.msk [vmem:[%s482] sm:$0xff] %vm513, %v1298
        %s1300 = sand.u32 %s316, 1
        %s1301 = scalar_lea.sflag [#allocation4], %s1300
        %s1302 = sand.u32 %s316, 1
        %s1303 = smul.addr %s1302, 8
        %s1304 = scalar_lea.vmem [#allocation10], %s1303
        // Predicated region
        $region89: #{tpu_custom_call.1} parent=71 // pred_check
          %p1305 = pneg %p326
        $region90: #{tpu_custom_call.1} parent=71 // pred_check_branch
          %1307 = sbr.rel (%p1305) target = $region92
        $region91: #{tpu_custom_call.1} parent=71 // pred_region
          %s1309 = ssub.s32 128, 128
          %1310 = vsyncadd %s1301, %s1309
          %s1311 = smul.addr %s30, 128
          %s1312 = scalar_lea.hbm %s13, %s1311
          %s1314 = sshll.u32 %s1304, 4
          %s1315 = int_to_ptr.vmem [resolvable:$true] %s1314
          %1317 = dma.vmem_to_hbm [thread:$0]  %s1315, 128, %s1312, %s1301
        $region92: #{tpu_custom_call.1} parent=71 // pred_fallthru
          _
      $region72: #{tpu_custom_call.1} parent=5 // pred_fallthru
        _
      %p1318 = scmp.le.s32.totalorder 2, %s25
      // Predicated region
      $region93: #{tpu_custom_call.1} parent=5 // pred_check
        %p1319 = pneg %p1318
      $region94: #{tpu_custom_call.1} parent=5 // pred_check_branch
        %1321 = sbr.rel (%p1319) target = $region96
      $region95: #{tpu_custom_call.1} parent=5 // pred_region
        %s1322 = ssub.s32 %s25, 2
        // Predicated region
        $region97: #{tpu_custom_call.1} parent=95 // pred_check
          %p1323 = pneg %p332
        $region98: #{tpu_custom_call.1} parent=95 // pred_check_branch
          %1325 = sbr.rel (%p1323) target = $region100
        $region99: #{tpu_custom_call.1} parent=95 // pred_region
          %s1326 = sand.u32 %s317, 1
          %s1327 = scalar_lea.sflag [#allocation4], %s1326
          %s1328 = sand.u32 %s317, 1
          %s1329 = smul.addr %s1328, 8
          %s1330 = scalar_lea.vmem [#allocation10], %s1329
          %1331 = dma.done %s1327, 128
        $region100: #{tpu_custom_call.1} parent=95 // pred_fallthru
          _
      $region96: #{tpu_custom_call.1} parent=5 // pred_fallthru
        _
    $region6: #{tpu_custom_call.1} parent=1 // loop_footer
      %s29 = sadd.s32 1, %s25
    $region7: #{tpu_custom_call.1} parent=1 // loop_footer_branch
      %24 = sbr.rel target = $region3
    $region8: #{tpu_custom_call.1} parent=1 // loop_exit
      _
    %1332 = vsyncpa [#allocation3], 1
    %s1333 = scalar_lea.sflag [#allocation3], 1
    %1334 = vsyncpa %s1333, 1
    %1335 = vsyncpa [#allocation6], 1
    %1336 = vsyncpa [#allocation9], 1
    %1337 = vsyncpa [#allocation4], 1
    %s1338 = scalar_lea.sflag [#allocation4], 1
    %1339 = vsyncpa %s1338, 1

</llo_original>
